<compile_context>
chip_gen: v7x
topology: tpu7x:2x2x1
jax: 0.10.0
libtpu: 0.0.40
codegen_flags: <defaults>
</compile_context>

<pallas_src>
import functools

import jax
import jax.numpy as jnp
from jax.experimental import pallas as pl
from jax.experimental.pallas import tpu as pltpu

EPS = 1e-5  # PyTorch LayerNorm default


def _layernorm(x, gamma, beta):
    # x: [R, D] f32, gamma/beta: [1, D] f32
    mu = jnp.mean(x, axis=-1, keepdims=True)
    var = jnp.mean((x - mu) ** 2, axis=-1, keepdims=True)
    return (x - mu) * jax.lax.rsqrt(var + EPS) * gamma + beta


def _layer_kernel(x_ref,
                  ag_ref, ab_ref, wqkv_ref, wout_ref, bout_ref,
                  fg_ref, fb_ref, w1_ref, b1_ref, w2_ref, b2_ref,
                  o_ref,
                  *, heads, dim_head, tb, n, ff_chunk):
    """One fused transformer layer on a slab of tb sequences (r = tb*n rows)."""
    cdt = wqkv_ref.dtype                 # matmul compute dtype (bf16)
    inner = heads * dim_head
    r = tb * n
    d_model = x_ref.shape[-1]
    mlp_dim = w1_ref.shape[-1]

    x = x_ref[...]                        # [r, D] f32 (residual stream)

    # ---------- attention half: LN -> QKV -> softmax attn -> proj -> +x ----
    y = _layernorm(x, ag_ref[...], ab_ref[...])
    qkv = jnp.dot(y.astype(cdt), wqkv_ref[...],
                  preferred_element_type=jnp.float32)     # [r, 3*inner] f32
    # Single bf16 cast; reshape splits rows -> (tb, n): relayout-free (n%8==0).
    qkv = qkv.astype(cdt).reshape(tb, n, 3 * inner)

    # Per-head attention; each head's output is projected immediately and
    # accumulated (no scratch buffer, no masked column stores, no concat).
    proj = jnp.zeros((r, d_model), jnp.float32)
    for h in range(heads):
        lo = h * dim_head
        qh = qkv[:, :, lo:lo + dim_head]                  # scale pre-folded in w_qkv
        kh = qkv[:, :, inner + lo:inner + lo + dim_head]
        vh = qkv[:, :, 2 * inner + lo:2 * inner + lo + dim_head]

        dots = jnp.einsum('tnd,tmd->tnm', qh, kh,
                          preferred_element_type=jnp.float32)      # [tb,n,n] f32
        dots = dots - jnp.max(dots, axis=-1, keepdims=True)
        e = jnp.exp(dots)                                          # EUP
        p = (e * pl.reciprocal(jnp.sum(e, axis=-1, keepdims=True),
                               approx=True)).astype(cdt)
        oh = jnp.einsum('tnm,tmd->tnd', p, vh,
                        preferred_element_type=jnp.float32)        # [tb,n,dh]
        # sum_h oh @ w_out[h*dh:(h+1)*dh, :]  ==  concat_h(oh) @ w_out
        proj = proj + jnp.dot(oh.reshape(r, dim_head).astype(cdt),
                              wout_ref[lo:lo + dim_head, :],
                              preferred_element_type=jnp.float32)
    x = proj + bout_ref[...] + x                                   # residual

    # ---------- feed-forward half: LN -> Linear -> SiLU -> Linear -> +x ----
    y = _layernorm(x, fg_ref[...], fb_ref[...]).astype(cdt)        # one cast
    h2 = jnp.zeros((r, d_model), jnp.float32)
    for c in range(mlp_dim // ff_chunk):                           # bound h1 size
        cl = c * ff_chunk
        h1 = (jnp.dot(y, w1_ref[:, cl:cl + ff_chunk],
                      preferred_element_type=jnp.float32)
              + b1_ref[:, cl:cl + ff_chunk])
        h1 = h1 * jax.nn.sigmoid(h1)                               # SiLU, f32
        h2 = h2 + jnp.dot(h1.astype(cdt), w2_ref[cl:cl + ff_chunk, :],
                          preferred_element_type=jnp.float32)
    o_ref[...] = (h2 + b2_ref[...] + x).astype(o_ref.dtype)        # residual


# ---------------- tiling / VMEM heuristics ---------------------------------
def _vmem_capacity_bytes():
    try:
        cap = getattr(pltpu.get_tpu_info(), "vmem_capacity_bytes", None)
        if cap:
            return int(cap)
    except Exception:
        pass
    return 64 << 20   # conservative (v7x per-TC VMEM)


def _per_row_bytes(d_model, inner, ff_chunk):
    # Rough per-activation-row VMEM footprint of the fused layer.
    return (16 * d_model          # x in + out, double-buffered, f32
            + 6 * 3 * inner       # qkv f32 result + bf16 copy
            + 8 * d_model         # attn / ffn f32 accumulators + residual temps
            + 6 * ff_chunk)       # h1 chunk f32 + bf16


def _pick_ff_chunk(mlp_dim, max_chunk=2048):
    best = 1
    for c in range(1, mlp_dim + 1):
        if mlp_dim % c == 0 and c <= max_chunk:
            best = c
    return best


def _pick_tb(bp, n, per_row_bytes, budget):
    """Largest divisor of bp whose slab fits the VMEM budget, preferring
    256-aligned row counts (MXU M on v6e/v7x) and an even grid-step count
    (clean 2-TensorCore split on v7x)."""
    divs = [d for d in range(1, bp + 1) if bp % d == 0]
    fits = [d for d in divs if d * n * per_row_bytes <= budget] or [1]

    def score(d):
        rows, steps = d * n, bp // d
        return (rows % 256 == 0, steps % 2 == 0 or steps == 1, rows)

    return max(fits, key=score)


# ---------------- per-layer pallas_call wrapper -----------------------------
def _layer(x_flat, attn_p, ff_p, heads, dim_head, tb, n, ff_chunk, vmem_limit):
    R, D = x_flat.shape
    inner = heads * dim_head
    mlp_dim = ff_p["w1"].shape[1]
    rows = tb * n
    grid = (R // rows,)

    kernel = functools.partial(_layer_kernel, heads=heads, dim_head=dim_head,
                               tb=tb, n=n, ff_chunk=ff_chunk)
    # Whole-array VMEM operands: copied once, single-buffered (no per-step DMA).
    wspec = pl.BlockSpec(memory_space=pltpu.MemorySpace.VMEM)

    nseq = R // n
    flops = (2 * R * D * 3 * inner          # qkv projection
             + 4 * nseq * n * n * inner     # QK^T + PV
             + 2 * R * inner * D            # output projection
             + 4 * R * D * mlp_dim)         # feed-forward
    transcendentals = nseq * heads * n * n + R * mlp_dim + nseq * heads * n
    weight_bytes = sum(int(v.size) * v.dtype.itemsize
                       for part in (attn_p, ff_p) for v in part.values())
    bytes_accessed = 2 * R * D * 4 + weight_bytes

    return pl.pallas_call(
        kernel,
        out_shape=jax.ShapeDtypeStruct((R, D), x_flat.dtype),
        grid=grid,
        in_specs=[pl.BlockSpec((rows, D), lambda i: (i, 0))] + [wspec] * 11,
        out_specs=pl.BlockSpec((rows, D), lambda i: (i, 0)),
        compiler_params=pltpu.CompilerParams(
            dimension_semantics=("parallel",),
            vmem_limit_bytes=int(vmem_limit)),
        cost_estimate=pl.CostEstimate(flops=int(flops),
                                      transcendentals=int(transcendentals),
                                      bytes_accessed=int(bytes_accessed)),
    )(x_flat,
      attn_p["ln_g"], attn_p["ln_b"], attn_p["w_qkv"],
      attn_p["w_out"], attn_p["b_out"],
      ff_p["ln_g"], ff_p["ln_b"], ff_p["w1"], ff_p["b1"],
      ff_p["w2"], ff_p["b2"])


def transformer_forward(x, layers, heads, dim_head):
    """x: [B, P, N, D] -> [B, P, N, D] (layers = prepare_params(...) output)."""
    B, P, N, D = x.shape
    assert N % 8 == 0, "sequence length must be sublane-aligned"
    # TODO(synk): pad + mask ragged N (e.g. ViT N=197) instead of asserting.
    bp = B * P
    attn_p0, ff_p0 = layers[0]
    inner = attn_p0["w_qkv"].shape[1] // 3
    assert inner == heads * dim_head
    mlp_dim = ff_p0["w1"].shape[1]

    ff_chunk = _pick_ff_chunk(mlp_dim)
    cap = _vmem_capacity_bytes()
    weight_bytes = sum(int(v.size) * v.dtype.itemsize
                       for part in layers[0] for v in part.values())
    per_row = _per_row_bytes(D, inner, ff_chunk)
    budget = max(int(0.70 * cap) - weight_bytes, per_row * N)
    tb = _pick_tb(bp, N, per_row, budget)
    rows = tb * N
    vmem_limit = min(int(0.92 * cap),
                     max(weight_bytes + 2 * rows * per_row + (8 << 20), 32 << 20))

    h = x.reshape(bp * N, D)
    for attn_p, ff_p in layers:
        h = _layer(h, attn_p, ff_p, heads, dim_head, tb, N, ff_chunk, vmem_limit)
    return h.reshape(B, P, N, D)


# ---------------- parameter init / prep (deterministic, synthetic) ---------
def init_params(key, dim, depth, heads, dim_head, mlp_dim):
    """Raw f32 parameters (PyTorch-equivalent layout)."""
    inner = heads * dim_head
    layers = []
    for d in range(depth):
        ks = jax.random.split(jax.random.fold_in(key, d), 10)
        attn_p = dict(
            ln_g=1.0 + 0.1 * jax.random.normal(ks[0], (1, dim), jnp.float32),
            ln_b=0.1 * jax.random.normal(ks[1], (1, dim), jnp.float32),
            w_qkv=jax.random.normal(ks[2], (dim, 3 * inner), jnp.float32) * 0.05,
            w_out=jax.random.normal(ks[3], (inner, dim), jnp.float32) * 0.05,
            b_out=0.02 * jax.random.normal(ks[4], (1, dim), jnp.float32),
        )
        ff_p = dict(
            ln_g=1.0 + 0.1 * jax.random.normal(ks[5], (1, dim), jnp.float32),
            ln_b=0.1 * jax.random.normal(ks[6], (1, dim), jnp.float32),
            w1=jax.random.normal(ks[7], (dim, mlp_dim), jnp.float32) * 0.05,
            b1=0.02 * jax.random.normal(ks[8], (1, mlp_dim), jnp.float32),
            w2=jax.random.normal(ks[9], (mlp_dim, dim), jnp.float32) * 0.05,
            b2=jnp.zeros((1, dim), jnp.float32),
        )
        layers.append((attn_p, ff_p))
    return layers


def prepare_params(layers, dim_head, weight_dtype=jnp.bfloat16):
    """Kernel-ready params: bf16 weights, softmax scale folded into Q cols."""
    scale = dim_head ** (-0.5)
    prepared = []
    for ap, fp in layers:
        inner = ap["w_qkv"].shape[1] // 3
        wqkv = ap["w_qkv"].at[:, :inner].multiply(scale)   # offline, free
        a = dict(ln_g=ap["ln_g"], ln_b=ap["ln_b"],
                 w_qkv=wqkv.astype(weight_dtype),
                 w_out=ap["w_out"].astype(weight_dtype),
                 b_out=ap["b_out"])
        f = dict(ln_g=fp["ln_g"], ln_b=fp["ln_b"],
                 w1=fp["w1"].astype(weight_dtype), b1=fp["b1"],
                 w2=fp["w2"].astype(weight_dtype), b2=fp["b2"])
        prepared.append((a, f))
    return prepared


# ---------------- pure-JAX reference (PyTorch semantics, bf16 matmuls) -----
def _ref_forward(x, layers, heads, dim_head):
    cdt = jnp.bfloat16

    def ln(t, g, b):
        mu = jnp.mean(t, -1, keepdims=True)
        var = jnp.mean((t - mu) ** 2, -1, keepdims=True)
        return (t - mu) * jax.lax.rsqrt(var + EPS) * g + b

    B, P, N, D = x.shape
    scale = dim_head ** (-0.5)
    for ap, fp in layers:
        y = ln(x, ap["ln_g"][0], ap["ln_b"][0])
        qkv = jnp.dot(y.astype(cdt), ap["w_qkv"].astype(cdt),
                      preferred_element_type=jnp.float32)
        q, k, v = jnp.split(qkv, 3, axis=-1)

        def hsplit(t):
            return t.reshape(B, P, N, heads, dim_head).transpose(0, 1, 3, 2, 4)

        q, k, v = (hsplit(q).astype(cdt), hsplit(k).astype(cdt),
                   hsplit(v).astype(cdt))
        dots = jnp.einsum("bphnd,bphmd->bphnm", q, k,
                          preferred_element_type=jnp.float32) * scale
        attn = jax.nn.softmax(dots, axis=-1)
        out = jnp.einsum("bphnm,bphmd->bphnd", attn.astype(cdt), v,
                         preferred_element_type=jnp.float32)
        out = out.transpose(0, 1, 3, 2, 4).reshape(B, P, N, heads * dim_head)
        x = jnp.dot(out.astype(cdt), ap["w_out"].astype(cdt),
                    preferred_element_type=jnp.float32) + ap["b_out"][0] + x

        y = ln(x, fp["ln_g"][0], fp["ln_b"][0])
        h = jnp.dot(y.astype(cdt), fp["w1"].astype(cdt),
                    preferred_element_type=jnp.float32) + fp["b1"][0]
        h = h * jax.nn.sigmoid(h)
        x = jnp.dot(h.astype(cdt), fp["w2"].astype(cdt),
                    preferred_element_type=jnp.float32) + fp["b2"][0] + x
    return x


if __name__ == "__main__":
    # Small config: dim=32, depth=2, heads=4, dim_head=8, mlp_dim=64.
    # (At production ViT sizes, D / inner / mlp_dim should be multiples of
    #  128/256 for lane-dense stores and full MXU tiles — model-config choice.)
    B, P, N, dim = 2, 2, 8, 32
    depth, heads, dim_head, mlp_dim = 2, 4, 8, 64

    key = jax.random.PRNGKey(0)
    kx, kp = jax.random.split(key)
    x = jax.random.normal(kx, (B, P, N, dim), jnp.float32)

    raw_layers = init_params(kp, dim, depth, heads, dim_head, mlp_dim)
    layers = prepare_params(raw_layers, dim_head)

    out = transformer_forward(x, layers, heads, dim_head)
    out = jax.block_until_ready(out)

    ref = _ref_forward(x, raw_layers, heads, dim_head)
    assert out.shape == (B, P, N, dim)
    # tolerance covers bf16 matmul operands, the offline scale fold, and the
    # approx (EUP) reciprocal in the softmax normalization
    assert jnp.allclose(out, ref, atol=2e-2, rtol=2e-2), "mismatch vs reference"

    print("KERNEL_OK")
</pallas_src>

<mosaic_0001>
module attributes {stable_mosaic.version = 11 : i64} {
  func.func @_layer_kernel(%arg0: i32, %arg1: memref<32x32xf32, #tpu.memory_space<vmem>>, %arg2: memref<1x32xf32, #tpu.memory_space<vmem>>, %arg3: memref<1x32xf32, #tpu.memory_space<vmem>>, %arg4: memref<32x96xbf16, #tpu.memory_space<vmem>>, %arg5: memref<32x32xbf16, #tpu.memory_space<vmem>>, %arg6: memref<1x32xf32, #tpu.memory_space<vmem>>, %arg7: memref<1x32xf32, #tpu.memory_space<vmem>>, %arg8: memref<1x32xf32, #tpu.memory_space<vmem>>, %arg9: memref<32x64xbf16, #tpu.memory_space<vmem>>, %arg10: memref<1x64xf32, #tpu.memory_space<vmem>>, %arg11: memref<64x32xbf16, #tpu.memory_space<vmem>>, %arg12: memref<1x32xf32, #tpu.memory_space<vmem>>, %arg13: memref<32x32xf32, #tpu.memory_space<vmem>>) attributes {dimension_semantics = [#tpu.dimension_semantics<parallel>], iteration_bounds = array<i64: 1>, scalar_prefetch = 0 : i64, scratch_operands = 0 : i64, tpu.core_type = #tpu.core_type<tc>, window_params = [{transform_indices = @transform_0, window_bounds = array<i64: 32, 32>}, {pipeline_mode = #tpu.pipeline_mode<synchronous>, transform_indices = @transform_1, window_bounds = array<i64: 1, 32>}, {pipeline_mode = #tpu.pipeline_mode<synchronous>, transform_indices = @transform_2, window_bounds = array<i64: 1, 32>}, {pipeline_mode = #tpu.pipeline_mode<synchronous>, transform_indices = @transform_3, window_bounds = array<i64: 32, 96>}, {pipeline_mode = #tpu.pipeline_mode<synchronous>, transform_indices = @transform_4, window_bounds = array<i64: 32, 32>}, {pipeline_mode = #tpu.pipeline_mode<synchronous>, transform_indices = @transform_5, window_bounds = array<i64: 1, 32>}, {pipeline_mode = #tpu.pipeline_mode<synchronous>, transform_indices = @transform_6, window_bounds = array<i64: 1, 32>}, {pipeline_mode = #tpu.pipeline_mode<synchronous>, transform_indices = @transform_7, window_bounds = array<i64: 1, 32>}, {pipeline_mode = #tpu.pipeline_mode<synchronous>, transform_indices = @transform_8, window_bounds = array<i64: 32, 64>}, {pipeline_mode = #tpu.pipeline_mode<synchronous>, transform_indices = @transform_9, window_bounds = array<i64: 1, 64>}, {pipeline_mode = #tpu.pipeline_mode<synchronous>, transform_indices = @transform_10, window_bounds = array<i64: 64, 32>}, {pipeline_mode = #tpu.pipeline_mode<synchronous>, transform_indices = @transform_11, window_bounds = array<i64: 1, 32>}, {transform_indices = @transform_12, window_bounds = array<i64: 32, 32>}]} {
    %c0 = arith.constant 0 : index
    %c0_0 = arith.constant 0 : index
    %0 = vector.load %arg1[%c0, %c0_0] : memref<32x32xf32, #tpu.memory_space<vmem>>, vector<32x32xf32>
    %c0_1 = arith.constant 0 : index
    %c0_2 = arith.constant 0 : index
    %1 = vector.load %arg2[%c0_1, %c0_2] : memref<1x32xf32, #tpu.memory_space<vmem>>, vector<1x32xf32>
    %c0_3 = arith.constant 0 : index
    %c0_4 = arith.constant 0 : index
    %2 = vector.load %arg3[%c0_3, %c0_4] : memref<1x32xf32, #tpu.memory_space<vmem>>, vector<1x32xf32>
    %cst = arith.constant dense<0.000000e+00> : vector<32xf32>
    %3 = vector.multi_reduction <add>, %0, %cst [1] : vector<32x32xf32> to vector<32xf32>
    %4 = vector.shape_cast %3 : vector<32xf32> to vector<32x1xf32>
    %cst_5 = arith.constant 3.200000e+01 : f32
    %5 = vector.broadcast %cst_5 : f32 to vector<32x1xf32>
    %6 = arith.divf %4, %5 : vector<32x1xf32>
    %7 = vector.broadcast %6 : vector<32x1xf32> to vector<32x32xf32>
    %8 = arith.subf %0, %7 : vector<32x32xf32>
    %9 = arith.mulf %8, %8 : vector<32x32xf32>
    %cst_6 = arith.constant dense<0.000000e+00> : vector<32xf32>
    %10 = vector.multi_reduction <add>, %9, %cst_6 [1] : vector<32x32xf32> to vector<32xf32>
    %11 = vector.shape_cast %10 : vector<32xf32> to vector<32x1xf32>
    %cst_7 = arith.constant 3.200000e+01 : f32
    %12 = vector.broadcast %cst_7 : f32 to vector<32x1xf32>
    %13 = arith.divf %11, %12 : vector<32x1xf32>
    %14 = vector.broadcast %6 : vector<32x1xf32> to vector<32x32xf32>
    %15 = arith.subf %0, %14 : vector<32x32xf32>
    %cst_8 = arith.constant 9.99999974E-6 : f32
    %16 = vector.broadcast %cst_8 : f32 to vector<32x1xf32>
    %17 = arith.addf %13, %16 : vector<32x1xf32>
    %18 = math.rsqrt %17 : vector<32x1xf32>
    %19 = vector.broadcast %18 : vector<32x1xf32> to vector<32x32xf32>
    %20 = arith.mulf %15, %19 : vector<32x32xf32>
    %21 = vector.broadcast %1 : vector<1x32xf32> to vector<32x32xf32>
    %22 = arith.mulf %20, %21 : vector<32x32xf32>
    %23 = vector.broadcast %2 : vector<1x32xf32> to vector<32x32xf32>
    %24 = arith.addf %22, %23 : vector<32x32xf32>
    %25 = arith.truncf %24 : vector<32x32xf32> to vector<32x32xbf16>
    %c0_9 = arith.constant 0 : index
    %c0_10 = arith.constant 0 : index
    %26 = vector.load %arg4[%c0_9, %c0_10] : memref<32x96xbf16, #tpu.memory_space<vmem>>, vector<32x96xbf16>
    %cst_11 = arith.constant dense<0.000000e+00> : vector<32x96xf32>
    %27 = tpu.matmul %25, %26, %cst_11 {dimension_numbers = #tpu.dot_dimension_numbers<[1], [0], [0], [1], [0, 0, 1, 1], [], []>} : vector<32x32xbf16>, vector<32x96xbf16>, vector<32x96xf32> -> vector<32x96xf32>
    %28 = arith.truncf %27 : vector<32x96xf32> to vector<32x96xbf16>
    %29 = vector.shape_cast %28 : vector<32x96xbf16> to vector<4x8x96xbf16>
    %cst_12 = arith.constant 0.000000e+00 : f32
    %30 = vector.broadcast %cst_12 : f32 to vector<32x32xf32>
    %31 = vector.extract_strided_slice %29 {offsets = [0, 0, 0], sizes = [4, 8, 8], strides = [1, 1, 1]} : vector<4x8x96xbf16> to vector<4x8x8xbf16>
    %32 = vector.extract_strided_slice %29 {offsets = [0, 0, 32], sizes = [4, 8, 8], strides = [1, 1, 1]} : vector<4x8x96xbf16> to vector<4x8x8xbf16>
    %33 = vector.extract_strided_slice %29 {offsets = [0, 0, 64], sizes = [4, 8, 8], strides = [1, 1, 1]} : vector<4x8x96xbf16> to vector<4x8x8xbf16>
    "tpu.trace_start"() <{level = 10 : i32, message = "tnd,tmd->tnm"}> : () -> ()
    %cst_13 = arith.constant dense<0.000000e+00> : vector<4x8x8xf32>
    %34 = tpu.matmul %31, %32, %cst_13 {dimension_numbers = #tpu.dot_dimension_numbers<[2], [2], [1], [1], [0, 0, 0, 1, 1, 1], [0], [0]>} : vector<4x8x8xbf16>, vector<4x8x8xbf16>, vector<4x8x8xf32> -> vector<4x8x8xf32>
    "tpu.trace_stop"() : () -> ()
    %cst_14 = arith.constant dense<0xFF800000> : vector<4x8xf32>
    %35 = vector.multi_reduction <maximumf>, %34, %cst_14 [2] : vector<4x8x8xf32> to vector<4x8xf32>
    %36 = vector.shape_cast %35 : vector<4x8xf32> to vector<4x8x1xf32>
    %37 = vector.broadcast %36 : vector<4x8x1xf32> to vector<4x8x8xf32>
    %38 = arith.subf %34, %37 : vector<4x8x8xf32>
    %39 = math.exp %38 : vector<4x8x8xf32>
    %cst_15 = arith.constant dense<0.000000e+00> : vector<4x8xf32>
    %40 = vector.multi_reduction <add>, %39, %cst_15 [2] : vector<4x8x8xf32> to vector<4x8xf32>
    %41 = vector.shape_cast %40 : vector<4x8xf32> to vector<4x8x1xf32>
    %42 = tpu.reciprocal %41 {approx = true} : vector<4x8x1xf32> -> vector<4x8x1xf32>
    %43 = vector.broadcast %42 : vector<4x8x1xf32> to vector<4x8x8xf32>
    %44 = arith.mulf %39, %43 : vector<4x8x8xf32>
    %45 = arith.truncf %44 : vector<4x8x8xf32> to vector<4x8x8xbf16>
    "tpu.trace_start"() <{level = 10 : i32, message = "tnm,tmd->tnd"}> : () -> ()
    %cst_16 = arith.constant dense<0.000000e+00> : vector<4x8x8xf32>
    %46 = tpu.matmul %45, %33, %cst_16 {dimension_numbers = #tpu.dot_dimension_numbers<[2], [1], [1], [2], [0, 0, 0, 1, 1, 2], [0], [0]>} : vector<4x8x8xbf16>, vector<4x8x8xbf16>, vector<4x8x8xf32> -> vector<4x8x8xf32>
    "tpu.trace_stop"() : () -> ()
    %47 = vector.shape_cast %46 : vector<4x8x8xf32> to vector<32x8xf32>
    %48 = arith.truncf %47 : vector<32x8xf32> to vector<32x8xbf16>
    %c0_17 = arith.constant 0 : index
    %c0_18 = arith.constant 0 : index
    %49 = vector.load %arg5[%c0_17, %c0_18] : memref<32x32xbf16, #tpu.memory_space<vmem>>, vector<8x32xbf16>
    %cst_19 = arith.constant dense<0.000000e+00> : vector<32x32xf32>
    %50 = tpu.matmul %48, %49, %cst_19 {dimension_numbers = #tpu.dot_dimension_numbers<[1], [0], [0], [1], [0, 0, 1, 1], [], []>} : vector<32x8xbf16>, vector<8x32xbf16>, vector<32x32xf32> -> vector<32x32xf32>
    %51 = arith.addf %30, %50 : vector<32x32xf32>
    %52 = vector.extract_strided_slice %29 {offsets = [0, 0, 8], sizes = [4, 8, 8], strides = [1, 1, 1]} : vector<4x8x96xbf16> to vector<4x8x8xbf16>
    %53 = vector.extract_strided_slice %29 {offsets = [0, 0, 40], sizes = [4, 8, 8], strides = [1, 1, 1]} : vector<4x8x96xbf16> to vector<4x8x8xbf16>
    %54 = vector.extract_strided_slice %29 {offsets = [0, 0, 72], sizes = [4, 8, 8], strides = [1, 1, 1]} : vector<4x8x96xbf16> to vector<4x8x8xbf16>
    "tpu.trace_start"() <{level = 10 : i32, message = "tnd,tmd->tnm"}> : () -> ()
    %cst_20 = arith.constant dense<0.000000e+00> : vector<4x8x8xf32>
    %55 = tpu.matmul %52, %53, %cst_20 {dimension_numbers = #tpu.dot_dimension_numbers<[2], [2], [1], [1], [0, 0, 0, 1, 1, 1], [0], [0]>} : vector<4x8x8xbf16>, vector<4x8x8xbf16>, vector<4x8x8xf32> -> vector<4x8x8xf32>
    "tpu.trace_stop"() : () -> ()
    %cst_21 = arith.constant dense<0xFF800000> : vector<4x8xf32>
    %56 = vector.multi_reduction <maximumf>, %55, %cst_21 [2] : vector<4x8x8xf32> to vector<4x8xf32>
    %57 = vector.shape_cast %56 : vector<4x8xf32> to vector<4x8x1xf32>
    %58 = vector.broadcast %57 : vector<4x8x1xf32> to vector<4x8x8xf32>
    %59 = arith.subf %55, %58 : vector<4x8x8xf32>
    %60 = math.exp %59 : vector<4x8x8xf32>
    %cst_22 = arith.constant dense<0.000000e+00> : vector<4x8xf32>
    %61 = vector.multi_reduction <add>, %60, %cst_22 [2] : vector<4x8x8xf32> to vector<4x8xf32>
    %62 = vector.shape_cast %61 : vector<4x8xf32> to vector<4x8x1xf32>
    %63 = tpu.reciprocal %62 {approx = true} : vector<4x8x1xf32> -> vector<4x8x1xf32>
    %64 = vector.broadcast %63 : vector<4x8x1xf32> to vector<4x8x8xf32>
    %65 = arith.mulf %60, %64 : vector<4x8x8xf32>
    %66 = arith.truncf %65 : vector<4x8x8xf32> to vector<4x8x8xbf16>
    "tpu.trace_start"() <{level = 10 : i32, message = "tnm,tmd->tnd"}> : () -> ()
    %cst_23 = arith.constant dense<0.000000e+00> : vector<4x8x8xf32>
    %67 = tpu.matmul %66, %54, %cst_23 {dimension_numbers = #tpu.dot_dimension_numbers<[2], [1], [1], [2], [0, 0, 0, 1, 1, 2], [0], [0]>} : vector<4x8x8xbf16>, vector<4x8x8xbf16>, vector<4x8x8xf32> -> vector<4x8x8xf32>
    "tpu.trace_stop"() : () -> ()
    %68 = vector.shape_cast %67 : vector<4x8x8xf32> to vector<32x8xf32>
    %69 = arith.truncf %68 : vector<32x8xf32> to vector<32x8xbf16>
    %c8 = arith.constant 8 : index
    %c0_24 = arith.constant 0 : index
    %70 = vector.load %arg5[%c8, %c0_24] : memref<32x32xbf16, #tpu.memory_space<vmem>>, vector<8x32xbf16>
    %cst_25 = arith.constant dense<0.000000e+00> : vector<32x32xf32>
    %71 = tpu.matmul %69, %70, %cst_25 {dimension_numbers = #tpu.dot_dimension_numbers<[1], [0], [0], [1], [0, 0, 1, 1], [], []>} : vector<32x8xbf16>, vector<8x32xbf16>, vector<32x32xf32> -> vector<32x32xf32>
    %72 = arith.addf %51, %71 : vector<32x32xf32>
    %73 = vector.extract_strided_slice %29 {offsets = [0, 0, 16], sizes = [4, 8, 8], strides = [1, 1, 1]} : vector<4x8x96xbf16> to vector<4x8x8xbf16>
    %74 = vector.extract_strided_slice %29 {offsets = [0, 0, 48], sizes = [4, 8, 8], strides = [1, 1, 1]} : vector<4x8x96xbf16> to vector<4x8x8xbf16>
    %75 = vector.extract_strided_slice %29 {offsets = [0, 0, 80], sizes = [4, 8, 8], strides = [1, 1, 1]} : vector<4x8x96xbf16> to vector<4x8x8xbf16>
    "tpu.trace_start"() <{level = 10 : i32, message = "tnd,tmd->tnm"}> : () -> ()
    %cst_26 = arith.constant dense<0.000000e+00> : vector<4x8x8xf32>
    %76 = tpu.matmul %73, %74, %cst_26 {dimension_numbers = #tpu.dot_dimension_numbers<[2], [2], [1], [1], [0, 0, 0, 1, 1, 1], [0], [0]>} : vector<4x8x8xbf16>, vector<4x8x8xbf16>, vector<4x8x8xf32> -> vector<4x8x8xf32>
    "tpu.trace_stop"() : () -> ()
    %cst_27 = arith.constant dense<0xFF800000> : vector<4x8xf32>
    %77 = vector.multi_reduction <maximumf>, %76, %cst_27 [2] : vector<4x8x8xf32> to vector<4x8xf32>
    %78 = vector.shape_cast %77 : vector<4x8xf32> to vector<4x8x1xf32>
    %79 = vector.broadcast %78 : vector<4x8x1xf32> to vector<4x8x8xf32>
    %80 = arith.subf %76, %79 : vector<4x8x8xf32>
    %81 = math.exp %80 : vector<4x8x8xf32>
    %cst_28 = arith.constant dense<0.000000e+00> : vector<4x8xf32>
    %82 = vector.multi_reduction <add>, %81, %cst_28 [2] : vector<4x8x8xf32> to vector<4x8xf32>
    %83 = vector.shape_cast %82 : vector<4x8xf32> to vector<4x8x1xf32>
    %84 = tpu.reciprocal %83 {approx = true} : vector<4x8x1xf32> -> vector<4x8x1xf32>
    %85 = vector.broadcast %84 : vector<4x8x1xf32> to vector<4x8x8xf32>
    %86 = arith.mulf %81, %85 : vector<4x8x8xf32>
    %87 = arith.truncf %86 : vector<4x8x8xf32> to vector<4x8x8xbf16>
    "tpu.trace_start"() <{level = 10 : i32, message = "tnm,tmd->tnd"}> : () -> ()
    %cst_29 = arith.constant dense<0.000000e+00> : vector<4x8x8xf32>
    %88 = tpu.matmul %87, %75, %cst_29 {dimension_numbers = #tpu.dot_dimension_numbers<[2], [1], [1], [2], [0, 0, 0, 1, 1, 2], [0], [0]>} : vector<4x8x8xbf16>, vector<4x8x8xbf16>, vector<4x8x8xf32> -> vector<4x8x8xf32>
    "tpu.trace_stop"() : () -> ()
    %89 = vector.shape_cast %88 : vector<4x8x8xf32> to vector<32x8xf32>
    %90 = arith.truncf %89 : vector<32x8xf32> to vector<32x8xbf16>
    %c16 = arith.constant 16 : index
    %c0_30 = arith.constant 0 : index
    %91 = vector.load %arg5[%c16, %c0_30] : memref<32x32xbf16, #tpu.memory_space<vmem>>, vector<8x32xbf16>
    %cst_31 = arith.constant dense<0.000000e+00> : vector<32x32xf32>
    %92 = tpu.matmul %90, %91, %cst_31 {dimension_numbers = #tpu.dot_dimension_numbers<[1], [0], [0], [1], [0, 0, 1, 1], [], []>} : vector<32x8xbf16>, vector<8x32xbf16>, vector<32x32xf32> -> vector<32x32xf32>
    %93 = arith.addf %72, %92 : vector<32x32xf32>
    %94 = vector.extract_strided_slice %29 {offsets = [0, 0, 24], sizes = [4, 8, 8], strides = [1, 1, 1]} : vector<4x8x96xbf16> to vector<4x8x8xbf16>
    %95 = vector.extract_strided_slice %29 {offsets = [0, 0, 56], sizes = [4, 8, 8], strides = [1, 1, 1]} : vector<4x8x96xbf16> to vector<4x8x8xbf16>
    %96 = vector.extract_strided_slice %29 {offsets = [0, 0, 88], sizes = [4, 8, 8], strides = [1, 1, 1]} : vector<4x8x96xbf16> to vector<4x8x8xbf16>
    "tpu.trace_start"() <{level = 10 : i32, message = "tnd,tmd->tnm"}> : () -> ()
    %cst_32 = arith.constant dense<0.000000e+00> : vector<4x8x8xf32>
    %97 = tpu.matmul %94, %95, %cst_32 {dimension_numbers = #tpu.dot_dimension_numbers<[2], [2], [1], [1], [0, 0, 0, 1, 1, 1], [0], [0]>} : vector<4x8x8xbf16>, vector<4x8x8xbf16>, vector<4x8x8xf32> -> vector<4x8x8xf32>
    "tpu.trace_stop"() : () -> ()
    %cst_33 = arith.constant dense<0xFF800000> : vector<4x8xf32>
    %98 = vector.multi_reduction <maximumf>, %97, %cst_33 [2] : vector<4x8x8xf32> to vector<4x8xf32>
    %99 = vector.shape_cast %98 : vector<4x8xf32> to vector<4x8x1xf32>
    %100 = vector.broadcast %99 : vector<4x8x1xf32> to vector<4x8x8xf32>
    %101 = arith.subf %97, %100 : vector<4x8x8xf32>
    %102 = math.exp %101 : vector<4x8x8xf32>
    %cst_34 = arith.constant dense<0.000000e+00> : vector<4x8xf32>
    %103 = vector.multi_reduction <add>, %102, %cst_34 [2] : vector<4x8x8xf32> to vector<4x8xf32>
    %104 = vector.shape_cast %103 : vector<4x8xf32> to vector<4x8x1xf32>
    %105 = tpu.reciprocal %104 {approx = true} : vector<4x8x1xf32> -> vector<4x8x1xf32>
    %106 = vector.broadcast %105 : vector<4x8x1xf32> to vector<4x8x8xf32>
    %107 = arith.mulf %102, %106 : vector<4x8x8xf32>
    %108 = arith.truncf %107 : vector<4x8x8xf32> to vector<4x8x8xbf16>
    "tpu.trace_start"() <{level = 10 : i32, message = "tnm,tmd->tnd"}> : () -> ()
    %cst_35 = arith.constant dense<0.000000e+00> : vector<4x8x8xf32>
    %109 = tpu.matmul %108, %96, %cst_35 {dimension_numbers = #tpu.dot_dimension_numbers<[2], [1], [1], [2], [0, 0, 0, 1, 1, 2], [0], [0]>} : vector<4x8x8xbf16>, vector<4x8x8xbf16>, vector<4x8x8xf32> -> vector<4x8x8xf32>
    "tpu.trace_stop"() : () -> ()
    %110 = vector.shape_cast %109 : vector<4x8x8xf32> to vector<32x8xf32>
    %111 = arith.truncf %110 : vector<32x8xf32> to vector<32x8xbf16>
    %c24 = arith.constant 24 : index
    %c0_36 = arith.constant 0 : index
    %112 = vector.load %arg5[%c24, %c0_36] : memref<32x32xbf16, #tpu.memory_space<vmem>>, vector<8x32xbf16>
    %cst_37 = arith.constant dense<0.000000e+00> : vector<32x32xf32>
    %113 = tpu.matmul %111, %112, %cst_37 {dimension_numbers = #tpu.dot_dimension_numbers<[1], [0], [0], [1], [0, 0, 1, 1], [], []>} : vector<32x8xbf16>, vector<8x32xbf16>, vector<32x32xf32> -> vector<32x32xf32>
    %114 = arith.addf %93, %113 : vector<32x32xf32>
    %c0_38 = arith.constant 0 : index
    %c0_39 = arith.constant 0 : index
    %115 = vector.load %arg6[%c0_38, %c0_39] : memref<1x32xf32, #tpu.memory_space<vmem>>, vector<1x32xf32>
    %116 = vector.broadcast %115 : vector<1x32xf32> to vector<32x32xf32>
    %117 = arith.addf %114, %116 : vector<32x32xf32>
    %118 = arith.addf %117, %0 : vector<32x32xf32>
    %c0_40 = arith.constant 0 : index
    %c0_41 = arith.constant 0 : index
    %119 = vector.load %arg7[%c0_40, %c0_41] : memref<1x32xf32, #tpu.memory_space<vmem>>, vector<1x32xf32>
    %c0_42 = arith.constant 0 : index
    %c0_43 = arith.constant 0 : index
    %120 = vector.load %arg8[%c0_42, %c0_43] : memref<1x32xf32, #tpu.memory_space<vmem>>, vector<1x32xf32>
    %cst_44 = arith.constant dense<0.000000e+00> : vector<32xf32>
    %121 = vector.multi_reduction <add>, %118, %cst_44 [1] : vector<32x32xf32> to vector<32xf32>
    %122 = vector.shape_cast %121 : vector<32xf32> to vector<32x1xf32>
    %cst_45 = arith.constant 3.200000e+01 : f32
    %123 = vector.broadcast %cst_45 : f32 to vector<32x1xf32>
    %124 = arith.divf %122, %123 : vector<32x1xf32>
    %125 = vector.broadcast %124 : vector<32x1xf32> to vector<32x32xf32>
    %126 = arith.subf %118, %125 : vector<32x32xf32>
    %127 = arith.mulf %126, %126 : vector<32x32xf32>
    %cst_46 = arith.constant dense<0.000000e+00> : vector<32xf32>
    %128 = vector.multi_reduction <add>, %127, %cst_46 [1] : vector<32x32xf32> to vector<32xf32>
    %129 = vector.shape_cast %128 : vector<32xf32> to vector<32x1xf32>
    %cst_47 = arith.constant 3.200000e+01 : f32
    %130 = vector.broadcast %cst_47 : f32 to vector<32x1xf32>
    %131 = arith.divf %129, %130 : vector<32x1xf32>
    %132 = vector.broadcast %124 : vector<32x1xf32> to vector<32x32xf32>
    %133 = arith.subf %118, %132 : vector<32x32xf32>
    %cst_48 = arith.constant 9.99999974E-6 : f32
    %134 = vector.broadcast %cst_48 : f32 to vector<32x1xf32>
    %135 = arith.addf %131, %134 : vector<32x1xf32>
    %136 = math.rsqrt %135 : vector<32x1xf32>
    %137 = vector.broadcast %136 : vector<32x1xf32> to vector<32x32xf32>
    %138 = arith.mulf %133, %137 : vector<32x32xf32>
    %139 = vector.broadcast %119 : vector<1x32xf32> to vector<32x32xf32>
    %140 = arith.mulf %138, %139 : vector<32x32xf32>
    %141 = vector.broadcast %120 : vector<1x32xf32> to vector<32x32xf32>
    %142 = arith.addf %140, %141 : vector<32x32xf32>
    %143 = arith.truncf %142 : vector<32x32xf32> to vector<32x32xbf16>
    %cst_49 = arith.constant 0.000000e+00 : f32
    %144 = vector.broadcast %cst_49 : f32 to vector<32x32xf32>
    %c0_50 = arith.constant 0 : index
    %c0_51 = arith.constant 0 : index
    %145 = vector.load %arg9[%c0_50, %c0_51] : memref<32x64xbf16, #tpu.memory_space<vmem>>, vector<32x64xbf16>
    %cst_52 = arith.constant dense<0.000000e+00> : vector<32x64xf32>
    %146 = tpu.matmul %143, %145, %cst_52 {dimension_numbers = #tpu.dot_dimension_numbers<[1], [0], [0], [1], [0, 0, 1, 1], [], []>} : vector<32x32xbf16>, vector<32x64xbf16>, vector<32x64xf32> -> vector<32x64xf32>
    %c0_53 = arith.constant 0 : index
    %c0_54 = arith.constant 0 : index
    %147 = vector.load %arg10[%c0_53, %c0_54] : memref<1x64xf32, #tpu.memory_space<vmem>>, vector<1x64xf32>
    %148 = vector.broadcast %147 : vector<1x64xf32> to vector<32x64xf32>
    %149 = arith.addf %146, %148 : vector<32x64xf32>
    %150 = arith.negf %149 : vector<32x64xf32>
    %151 = math.exp %150 : vector<32x64xf32>
    %cst_55 = arith.constant 1.000000e+00 : f32
    %152 = vector.broadcast %cst_55 : f32 to vector<32x64xf32>
    %153 = arith.addf %152, %151 : vector<32x64xf32>
    %154 = arith.divf %152, %153 : vector<32x64xf32>
    %155 = arith.mulf %149, %154 : vector<32x64xf32>
    %156 = arith.truncf %155 : vector<32x64xf32> to vector<32x64xbf16>
    %c0_56 = arith.constant 0 : index
    %c0_57 = arith.constant 0 : index
    %157 = vector.load %arg11[%c0_56, %c0_57] : memref<64x32xbf16, #tpu.memory_space<vmem>>, vector<64x32xbf16>
    %cst_58 = arith.constant dense<0.000000e+00> : vector<32x32xf32>
    %158 = tpu.matmul %156, %157, %cst_58 {dimension_numbers = #tpu.dot_dimension_numbers<[1], [0], [0], [1], [0, 0, 1, 1], [], []>} : vector<32x64xbf16>, vector<64x32xbf16>, vector<32x32xf32> -> vector<32x32xf32>
    %159 = arith.addf %144, %158 : vector<32x32xf32>
    %c0_59 = arith.constant 0 : index
    %c0_60 = arith.constant 0 : index
    %160 = vector.load %arg12[%c0_59, %c0_60] : memref<1x32xf32, #tpu.memory_space<vmem>>, vector<1x32xf32>
    %161 = vector.broadcast %160 : vector<1x32xf32> to vector<32x32xf32>
    %162 = arith.addf %159, %161 : vector<32x32xf32>
    %163 = arith.addf %162, %118 : vector<32x32xf32>
    %c0_61 = arith.constant 0 : index
    %c0_62 = arith.constant 0 : index
    %164 = vector.load %arg13[%c0_61, %c0_62] : memref<32x32xf32, #tpu.memory_space<vmem>>, vector<32x32xf32>
    tpu.vector_store %arg13[%c0_61, %c0_62], %163 {strides = array<i32>} : memref<32x32xf32, #tpu.memory_space<vmem>>, vector<32x32xf32>,
    return
  }
  func.func @transform_0(%arg0: i32) -> (i32, i32) {
    %c0_i32 = arith.constant 0 : i32
    %c0_i32_0 = arith.constant 0 : i32
    return %arg0, %c0_i32 : i32, i32
  }
  func.func @transform_1(%arg0: i32) -> (i32, i32) {
    %c0_i32 = arith.constant 0 : i32
    %c0_i32_0 = arith.constant 0 : i32
    %c0_i32_1 = arith.constant 0 : i32
    return %c0_i32, %c0_i32_0 : i32, i32
  }
  func.func @transform_2(%arg0: i32) -> (i32, i32) {
    %c0_i32 = arith.constant 0 : i32
    %c0_i32_0 = arith.constant 0 : i32
    %c0_i32_1 = arith.constant 0 : i32
    return %c0_i32, %c0_i32_0 : i32, i32
  }
  func.func @transform_3(%arg0: i32) -> (i32, i32) {
    %c0_i32 = arith.constant 0 : i32
    %c0_i32_0 = arith.constant 0 : i32
    %c0_i32_1 = arith.constant 0 : i32
    return %c0_i32, %c0_i32_0 : i32, i32
  }
  func.func @transform_4(%arg0: i32) -> (i32, i32) {
    %c0_i32 = arith.constant 0 : i32
    %c0_i32_0 = arith.constant 0 : i32
    %c0_i32_1 = arith.constant 0 : i32
    return %c0_i32, %c0_i32_0 : i32, i32
  }
  func.func @transform_5(%arg0: i32) -> (i32, i32) {
    %c0_i32 = arith.constant 0 : i32
    %c0_i32_0 = arith.constant 0 : i32
    %c0_i32_1 = arith.constant 0 : i32
    return %c0_i32, %c0_i32_0 : i32, i32
  }
  func.func @transform_6(%arg0: i32) -> (i32, i32) {
    %c0_i32 = arith.constant 0 : i32
    %c0_i32_0 = arith.constant 0 : i32
    %c0_i32_1 = arith.constant 0 : i32
    return %c0_i32, %c0_i32_0 : i32, i32
  }
  func.func @transform_7(%arg0: i32) -> (i32, i32) {
    %c0_i32 = arith.constant 0 : i32
    %c0_i32_0 = arith.constant 0 : i32
    %c0_i32_1 = arith.constant 0 : i32
    return %c0_i32, %c0_i32_0 : i32, i32
  }
  func.func @transform_8(%arg0: i32) -> (i32, i32) {
    %c0_i32 = arith.constant 0 : i32
    %c0_i32_0 = arith.constant 0 : i32
    %c0_i32_1 = arith.constant 0 : i32
    return %c0_i32, %c0_i32_0 : i32, i32
  }
  func.func @transform_9(%arg0: i32) -> (i32, i32) {
    %c0_i32 = arith.constant 0 : i32
    %c0_i32_0 = arith.constant 0 : i32
    %c0_i32_1 = arith.constant 0 : i32
    return %c0_i32, %c0_i32_0 : i32, i32
  }
  func.func @transform_10(%arg0: i32) -> (i32, i32) {
    %c0_i32 = arith.constant 0 : i32
    %c0_i32_0 = arith.constant 0 : i32
    %c0_i32_1 = arith.constant 0 : i32
    return %c0_i32, %c0_i32_0 : i32, i32
  }
  func.func @transform_11(%arg0: i32) -> (i32, i32) {
    %c0_i32 = arith.constant 0 : i32
    %c0_i32_0 = arith.constant 0 : i32
    %c0_i32_1 = arith.constant 0 : i32
    return %c0_i32, %c0_i32_0 : i32, i32
  }
  func.func @transform_12(%arg0: i32) -> (i32, i32) {
    %c0_i32 = arith.constant 0 : i32
    %c0_i32_0 = arith.constant 0 : i32
    return %arg0, %c0_i32 : i32, i32
  }
}

</mosaic_0001>

<llo_original>
// kernel: tpu_custom_call.1
$region0: #{tpu_custom_call.1}
  #allocation0 [shape = 'u32[]', space=smem, size = 0x4, offset = 0x4, fixed_abs, tag = 'smem constant byte address 0x4 - core index']
  #allocation1 [shape = 'u32[144,128]{1,0:T(1,128)}', space=vmem, size = 0x12000, scoped, tag = 'internal scratch']
  %s0 = inlined_call_operand.vmem [shape: f32[32,32], index: 0, kind: input, shape index: {}]
  %s1 = inlined_call_operand.vmem [shape: f32[1,32], index: 1, kind: input, shape index: {}]
  %s2 = inlined_call_operand.vmem [shape: f32[1,32], index: 2, kind: input, shape index: {}]
  %s3 = inlined_call_operand.vmem [shape: bf16[32,96], index: 3, kind: input, shape index: {}]
  %s4 = inlined_call_operand.hbm [shape: bf16[32,32], index: 4, kind: input, shape index: {}]
  %s5 = inlined_call_operand.vmem [shape: f32[1,32], index: 5, kind: input, shape index: {}]
  %s6 = inlined_call_operand.vmem [shape: f32[1,32], index: 6, kind: input, shape index: {}]
  %s7 = inlined_call_operand.vmem [shape: f32[1,32], index: 7, kind: input, shape index: {}]
  %s8 = inlined_call_operand.hbm [shape: bf16[32,64], index: 8, kind: input, shape index: {}]
  %s9 = inlined_call_operand.vmem [shape: f32[1,64], index: 9, kind: input, shape index: {}]
  %s10 = inlined_call_operand.vmem [shape: bf16[64,32], index: 10, kind: input, shape index: {}]
  %s11 = inlined_call_operand.vmem [shape: f32[1,32], index: 11, kind: input, shape index: {}]
  %s12 = inlined_call_operand.hbm [shape: f32[32,32], index: 12, kind: output, shape index: {}]
  %s13 = sld [smem:[#allocation0]]
  $region66: #{tpu_custom_call.1} parent=0
    _
  %s15 = ssub.s32 1, %s13
  %s16 = scalar_select 0, %s15, %s13
  $region1: #{tpu_custom_call.1} parent=0
    #allocation2 [shape = 'u8[8192]{0}', space=vmem, size = 0x2000, scoped, tag = 'input window, operand 4, single buffered']
    #allocation3 [shape = 's32[1]{0}', space=sflag, size = 0x4, scoped, tag = 'scoped memory for tpu_custom_call.1']
    #allocation4 [shape = 's32[1]{0}', space=sflag, size = 0x4, scoped, tag = 'scoped memory for tpu_custom_call.1']
    #allocation5 [shape = 'u8[8192]{0}', space=vmem, size = 0x2000, scoped, tag = 'input window, operand 8, single buffered']
    #allocation6 [shape = 's32[1]{0}', space=sflag, size = 0x4, scoped, tag = 'scoped memory for tpu_custom_call.1']
    #allocation7 [shape = 'u8[16384]{0}', space=vmem, size = 0x4000, scoped, tag = 'output window, operand 0, single buffered']
    %17 = vsyncpa [#allocation3], 0
    %18 = vsyncpa [#allocation6], 0
    %19 = vsyncpa [#allocation4], 0
    // Predicated region
    $region2: #{tpu_custom_call.1} parent=1 // pred_check
      _
    $region3: #{tpu_custom_call.1} parent=1 // pred_check_branch
      %21 = sbr.rel (0) target = $region5
    $region4: #{tpu_custom_call.1} parent=1 // pred_region
      _
    $region5: #{tpu_custom_call.1} parent=1 // pred_fallthru
      _
    // Predicated region
    $region6: #{tpu_custom_call.1} parent=1 // pred_check
      _
    $region7: #{tpu_custom_call.1} parent=1 // pred_check_branch
      %23 = sbr.rel (0) target = $region9
    $region8: #{tpu_custom_call.1} parent=1 // pred_region
      _
    $region9: #{tpu_custom_call.1} parent=1 // pred_fallthru
      _
    // Predicated region
    $region10: #{tpu_custom_call.1} parent=1 // pred_check
      _
    $region11: #{tpu_custom_call.1} parent=1 // pred_check_branch
      %25 = sbr.rel (0) target = $region13
    $region12: #{tpu_custom_call.1} parent=1 // pred_region
      _
    $region13: #{tpu_custom_call.1} parent=1 // pred_fallthru
      _
    // Predicated region
    $region14: #{tpu_custom_call.1} parent=1 // pred_check
      _
    $region15: #{tpu_custom_call.1} parent=1 // pred_check_branch
      %27 = sbr.rel (0) target = $region17
    $region16: #{tpu_custom_call.1} parent=1 // pred_region
      _
    $region17: #{tpu_custom_call.1} parent=1 // pred_fallthru
      _
    // Predicated region
    $region18: #{tpu_custom_call.1} parent=1 // pred_check
      _
    $region19: #{tpu_custom_call.1} parent=1 // pred_check_branch
      %29 = sbr.rel (0) target = $region21
    $region20: #{tpu_custom_call.1} parent=1 // pred_region
      %s31 = ssub.s32 256, 256
      %32 = vsyncadd [#allocation3], %s31
      %s33 = sshll.u32 [#allocation2], 4
      %s34 = int_to_ptr.vmem [resolvable:$true] %s33
      %39 = dma.hbm_to_vmem [thread:$0]  %s4, 256, %s34, [#allocation3], 64, 64, 4
    $region21: #{tpu_custom_call.1} parent=1 // pred_fallthru
      _
    // Predicated region
    $region22: #{tpu_custom_call.1} parent=1 // pred_check
      _
    $region23: #{tpu_custom_call.1} parent=1 // pred_check_branch
      %41 = sbr.rel (0) target = $region25
    $region24: #{tpu_custom_call.1} parent=1 // pred_region
      _
    $region25: #{tpu_custom_call.1} parent=1 // pred_fallthru
      _
    // Predicated region
    $region26: #{tpu_custom_call.1} parent=1 // pred_check
      _
    $region27: #{tpu_custom_call.1} parent=1 // pred_check_branch
      %43 = sbr.rel (0) target = $region29
    $region28: #{tpu_custom_call.1} parent=1 // pred_region
      _
    $region29: #{tpu_custom_call.1} parent=1 // pred_fallthru
      _
    // Predicated region
    $region30: #{tpu_custom_call.1} parent=1 // pred_check
      _
    $region31: #{tpu_custom_call.1} parent=1 // pred_check_branch
      %45 = sbr.rel (0) target = $region33
    $region32: #{tpu_custom_call.1} parent=1 // pred_region
      _
    $region33: #{tpu_custom_call.1} parent=1 // pred_fallthru
      _
    // Predicated region
    $region34: #{tpu_custom_call.1} parent=1 // pred_check
      _
    $region35: #{tpu_custom_call.1} parent=1 // pred_check_branch
      %47 = sbr.rel (0) target = $region37
    $region36: #{tpu_custom_call.1} parent=1 // pred_region
      %s49 = ssub.s32 256, 256
      %50 = vsyncadd [#allocation6], %s49
      %s51 = sshll.u32 [#allocation5], 4
      %s52 = int_to_ptr.vmem [resolvable:$true] %s51
      %57 = dma.hbm_to_vmem [thread:$0]  %s8, 256, %s52, [#allocation6], 64, 64, 4
    $region37: #{tpu_custom_call.1} parent=1 // pred_fallthru
      _
    // Predicated region
    $region38: #{tpu_custom_call.1} parent=1 // pred_check
      _
    $region39: #{tpu_custom_call.1} parent=1 // pred_check_branch
      %59 = sbr.rel (0) target = $region41
    $region40: #{tpu_custom_call.1} parent=1 // pred_region
      _
    $region41: #{tpu_custom_call.1} parent=1 // pred_fallthru
      _
    // Predicated region
    $region42: #{tpu_custom_call.1} parent=1 // pred_check
      _
    $region43: #{tpu_custom_call.1} parent=1 // pred_check_branch
      %61 = sbr.rel (0) target = $region45
    $region44: #{tpu_custom_call.1} parent=1 // pred_region
      _
    $region45: #{tpu_custom_call.1} parent=1 // pred_fallthru
      _
    // Predicated region
    $region46: #{tpu_custom_call.1} parent=1 // pred_check
      _
    $region47: #{tpu_custom_call.1} parent=1 // pred_check_branch
      %63 = sbr.rel (0) target = $region49
    $region48: #{tpu_custom_call.1} parent=1 // pred_region
      _
    $region49: #{tpu_custom_call.1} parent=1 // pred_fallthru
      _
    // Predicated region
    $region50: #{tpu_custom_call.1} parent=1 // pred_check
      _
    $region51: #{tpu_custom_call.1} parent=1 // pred_check_branch
      %65 = sbr.rel (0) target = $region53
    $region52: #{tpu_custom_call.1} parent=1 // pred_region
      %66 = dma.done [#allocation3], 256
    $region53: #{tpu_custom_call.1} parent=1 // pred_fallthru
      _
    // Predicated region
    $region54: #{tpu_custom_call.1} parent=1 // pred_check
      _
    $region55: #{tpu_custom_call.1} parent=1 // pred_check_branch
      %68 = sbr.rel (0) target = $region57
    $region56: #{tpu_custom_call.1} parent=1 // pred_region
      %69 = dma.done [#allocation6], 256
    $region57: #{tpu_custom_call.1} parent=1 // pred_fallthru
      _
    %v71 = vld [vmem:[%s0] sm:$0xff]
    %v72 = vld [vmem:[%s0 + $0x8] sm:$0xff]
    %v73 = vld [vmem:[%s0 + $0x10] sm:$0xff]
    %v74 = vld [vmem:[%s0 + $0x18] sm:$0xff]
    %v75 = vld [vmem:[%s1] sm:$0x1]
    %v76 = vld [vmem:[%s2] sm:$0x1]
    %vm77 = vcmask 261120
    %v78 = vsel %vm77, %v71, 0.0
    %79 = vadd.xlane.f32.xlu0 %v78
    %v80 = vpop.xlane.xlu0 %79
    %v81 = vsel %vm77, %v72, 0.0
    %82 = vadd.xlane.f32.xlu0 %v81
    %v83 = vpop.xlane.xlu0 %82
    %v84 = vsel %vm77, %v73, 0.0
    %85 = vadd.xlane.f32.xlu0 %v84
    %v86 = vpop.xlane.xlu0 %85
    %v87 = vsel %vm77, %v74, 0.0
    %88 = vadd.xlane.f32.xlu0 %v87
    %v89 = vpop.xlane.xlu0 %88
    %v90 = vrcp.pop 32.0
    %v91 = vmul.f32 %v80, %v90
    %v92 = vmul.f32 %v83, %v90
    %v93 = vmul.f32 %v86, %v90
    %v94 = vmul.f32 %v89, %v90
    %v95 = vsub.f32 %v71, %v91
    %v96 = vsub.f32 %v72, %v92
    %v97 = vsub.f32 %v73, %v93
    %v98 = vsub.f32 %v74, %v94
    %v99 = vmul.f32 %v95, %v95
    %v100 = vmul.f32 %v96, %v96
    %v101 = vmul.f32 %v97, %v97
    %v102 = vmul.f32 %v98, %v98
    %v103 = vsel %vm77, %v99, 0.0
    %104 = vadd.xlane.f32.xlu0 %v103
    %v105 = vpop.xlane.xlu0 %104
    %v106 = vsel %vm77, %v100, 0.0
    %107 = vadd.xlane.f32.xlu0 %v106
    %v108 = vpop.xlane.xlu0 %107
    %v109 = vsel %vm77, %v101, 0.0
    %110 = vadd.xlane.f32.xlu0 %v109
    %v111 = vpop.xlane.xlu0 %110
    %v112 = vsel %vm77, %v102, 0.0
    %113 = vadd.xlane.f32.xlu0 %v112
    %v114 = vpop.xlane.xlu0 %113
    %v115 = vmul.f32 %v105, %v90
    %v116 = vmul.f32 %v108, %v90
    %v117 = vmul.f32 %v111, %v90
    %v118 = vmul.f32 %v114, %v90
    %v119 = vadd.f32 %v115, 1e-05
    %v120 = vadd.f32 %v116, 1e-05
    %v121 = vadd.f32 %v117, 1e-05
    %v122 = vadd.f32 %v118, 1e-05
    %v123 = vrsqrt.pop %v119
    %v124 = vrsqrt.pop %v120
    %v125 = vrsqrt.pop %v121
    %v126 = vrsqrt.pop %v122
    %v127 = vmul.f32 %v95, %v123
    %v128 = vmul.f32 %v96, %v124
    %v129 = vmul.f32 %v97, %v125
    %v130 = vmul.f32 %v98, %v126
    %v132 = vlaneseq
    %v133 = vshrl.u32 %v132, 7
    %v134 = vsub.s32 0, %v133
    %v135 = vrot.slane %v75, %v134
    %v137 = vmul.f32 %v127, %v135
    %v138 = vmul.f32 %v128, %v135
    %v139 = vmul.f32 %v129, %v135
    %v140 = vmul.f32 %v130, %v135
    %v142 = vlaneseq
    %v143 = vshrl.u32 %v142, 7
    %v144 = vsub.s32 0, %v143
    %v145 = vrot.slane %v76, %v144
    %v147 = vadd.f32 %v137, %v145
    %v148 = vadd.f32 %v138, %v145
    %v149 = vadd.f32 %v139, %v145
    %v150 = vadd.f32 %v140, %v145
    %v151 = vpack.c.bf16 %v148, %v147
    %v152 = vpack.c.bf16 %v150, %v149
    %v153 = vld [vmem:[%s3] sm:$0xf]
    %v154 = vld [vmem:[%s3 + $0x4] sm:$0xf]
    %v155 = vld [vmem:[%s3 + $0x8] sm:$0xf]
    %v156 = vld [vmem:[%s3 + $0xc] sm:$0xf]
    %v161 = vunpack.c.l.b16 %v153
    %v162 = vunpack.c.l.b16 %v154
    %v163 = vunpack.c.l.b16 %v155
    %v164 = vunpack.c.l.b16 %v156
    %v165 = vpack.c.b16 %v162, %v161
    %v166 = vpack.c.b16 %v164, %v163
    %v170 = vsel %vm77, %v151, 0
    %v173 = vsel %vm77, %v152, 0
    %175 = vmatprep.subr.bf16.mxu0 0
    %176 = vmatpush1.bf16.msra.mxu0 %v165
    %177 = vmatprep.subr.bf16.mxu0 0
    %178 = vmatpush1.bf16.msra.mxu0 %v166
    %179 = vmatprep.subr.bf16.mxu0 0
    %180 = vmatpush1.bf16.msra.mxu0 0
    %181 = vmatprep.subr.bf16.mxu0 0
    %182 = vmatpush1.bf16.msra.mxu0 0
    %183 = vmatprep.subr.bf16.mxu0 0
    %184 = vmatpush1.bf16.msra.mxu0 0
    %185 = vmatprep.subr.bf16.mxu0 0
    %186 = vmatpush1.bf16.msra.mxu0 0
    %187 = vmatprep.subr.bf16.mxu0 0
    %188 = vmatpush1.bf16.msra.mxu0 0
    %189 = vmatprep.subr.bf16.mxu0 0
    %190 = vmatpush1.bf16.msra.mxu0 0
    %191 = vmatprep.subr.bf16.mxu0 0
    %192 = vmatpush1.bf16.msra.mxu0 0
    %193 = vmatprep.subr.bf16.mxu0 0
    %194 = vmatpush1.bf16.msra.mxu0 0
    %195 = vmatprep.subr.bf16.mxu0 0
    %196 = vmatpush1.bf16.msra.mxu0 0
    %197 = vmatprep.subr.bf16.mxu0 0
    %198 = vmatpush1.bf16.msra.mxu0 0
    %199 = vmatprep.subr.bf16.mxu0 0
    %200 = vmatpush1.bf16.msra.mxu0 0
    %201 = vmatprep.subr.bf16.mxu0 0
    %202 = vmatpush1.bf16.msra.mxu0 0
    %203 = vmatprep.subr.bf16.mxu0 0
    %204 = vmatpush1.bf16.msra.mxu0 0
    %205 = vmatprep.subr.bf16.mxu0 0
    %206 = vmatpush1.bf16.msra.mxu0 0
    %207 = vmatprep.mubr.bf16.mxu0 0
    %208 = vmatmul.mubr.bf16.gmra.mrb[0].mxu0 %v170
    %v209 = vpop.f32.mrb[0].mxu0
    %v210 = vadd.f32 0.0, %v209
    %v211 = vpop.f32.mrb[0].mxu0
    %v212 = vpop.f32.mrb[0].mxu0
    %v213 = vadd.f32 0.0, %v212
    %v214 = vpop.f32.mrb[0].mxu0
    %215 = vmatprep.mubr.bf16.mxu0 0
    %216 = vmatmul.mubr.bf16.gmra.mrb[0].mxu0 %v173
    %v217 = vpop.f32.mrb[0].mxu0
    %v218 = vadd.f32 0.0, %v217
    %v219 = vpop.f32.mrb[0].mxu0
    %v220 = vpop.f32.mrb[0].mxu0
    %v221 = vadd.f32 0.0, %v220
    %v222 = vpop.f32.mrb[0].mxu0
    %223 = vdwg.mxu0
    %v224 = vpack.c.bf16 %v213, %v210
    %v225 = vpack.c.bf16 %v221, %v218
    %v228 = vunpack.c.l.b16 %v224
    %v229 = vunpack.c.h.b16 %v224
    %v230 = vunpack.c.l.b16 %v225
    %v231 = vunpack.c.h.b16 %v225
    %v232 = vpack.c.b16 %v228, %v228
    %v233 = vpack.c.b16 %v229, %v229
    %v234 = vpack.c.b16 %v230, %v230
    %v235 = vpack.c.b16 %v231, %v231
    %236 = vrot.lane.b32.xlu0 %v232, 96
    %v237 = vpop.permute.xlu0 %236
    %vm238 = vcmask 64512
    %v240 = vsel %vm238, %v232, 0
    %v243 = vsel %vm238, %v237, 0
    %245 = vmatprep.subr.bf16.mxu0 0
    %246 = vmatpush1.bf16.xpose.msra.mxu0 %v243
    %247 = vmatprep.subr.bf16.mxu0 0
    %248 = vmatpush1.bf16.xpose.msra.mxu0 0
    %249 = vmatprep.subr.bf16.mxu0 0
    %250 = vmatpush1.bf16.xpose.msra.mxu0 0
    %251 = vmatprep.subr.bf16.mxu0 0
    %252 = vmatpush1.bf16.xpose.msra.mxu0 0
    %253 = vmatprep.subr.bf16.mxu0 0
    %254 = vmatpush1.bf16.xpose.msra.mxu0 0
    %255 = vmatprep.subr.bf16.mxu0 0
    %256 = vmatpush1.bf16.xpose.msra.mxu0 0
    %257 = vmatprep.subr.bf16.mxu0 0
    %258 = vmatpush1.bf16.xpose.msra.mxu0 0
    %259 = vmatprep.subr.bf16.mxu0 0
    %260 = vmatpush1.bf16.xpose.msra.mxu0 0
    %261 = vmatprep.subr.bf16.mxu0 0
    %262 = vmatpush1.bf16.xpose.msra.mxu0 0
    %263 = vmatprep.subr.bf16.mxu0 0
    %264 = vmatpush1.bf16.xpose.msra.mxu0 0
    %265 = vmatprep.subr.bf16.mxu0 0
    %266 = vmatpush1.bf16.xpose.msra.mxu0 0
    %267 = vmatprep.subr.bf16.mxu0 0
    %268 = vmatpush1.bf16.xpose.msra.mxu0 0
    %269 = vmatprep.subr.bf16.mxu0 0
    %270 = vmatpush1.bf16.xpose.msra.mxu0 0
    %271 = vmatprep.subr.bf16.mxu0 0
    %272 = vmatpush1.bf16.xpose.msra.mxu0 0
    %273 = vmatprep.subr.bf16.mxu0 0
    %274 = vmatpush1.bf16.xpose.msra.mxu0 0
    %275 = vmatprep.subr.bf16.mxu0 0
    %276 = vmatpush1.bf16.xpose.msra.mxu0 0
    %277 = vmatprep.mubr.bf16.mxu0 0
    %278 = vmatmul.mubr.bf16.gmra.mrb[0].mxu0 %v240
    %v279 = vpop.f32.mrb[0].mxu0
    %v280 = vadd.f32 0.0, %v279
    %v281 = vpop.f32.mrb[0].mxu0
    %v282 = vpop.f32.mrb[0].mxu0
    %v283 = vpop.f32.mrb[0].mxu0
    %284 = vdwg.mxu0
    %285 = vrot.lane.b32.xlu0 %v233, 96
    %v286 = vpop.permute.xlu0 %285
    %v288 = vsel %vm238, %v233, 0
    %v291 = vsel %vm238, %v286, 0
    %293 = vmatprep.subr.bf16.mxu0 0
    %294 = vmatpush1.bf16.xpose.msra.mxu0 %v291
    %295 = vmatprep.subr.bf16.mxu0 0
    %296 = vmatpush1.bf16.xpose.msra.mxu0 0
    %297 = vmatprep.subr.bf16.mxu0 0
    %298 = vmatpush1.bf16.xpose.msra.mxu0 0
    %299 = vmatprep.subr.bf16.mxu0 0
    %300 = vmatpush1.bf16.xpose.msra.mxu0 0
    %301 = vmatprep.subr.bf16.mxu0 0
    %302 = vmatpush1.bf16.xpose.msra.mxu0 0
    %303 = vmatprep.subr.bf16.mxu0 0
    %304 = vmatpush1.bf16.xpose.msra.mxu0 0
    %305 = vmatprep.subr.bf16.mxu0 0
    %306 = vmatpush1.bf16.xpose.msra.mxu0 0
    %307 = vmatprep.subr.bf16.mxu0 0
    %308 = vmatpush1.bf16.xpose.msra.mxu0 0
    %309 = vmatprep.subr.bf16.mxu0 0
    %310 = vmatpush1.bf16.xpose.msra.mxu0 0
    %311 = vmatprep.subr.bf16.mxu0 0
    %312 = vmatpush1.bf16.xpose.msra.mxu0 0
    %313 = vmatprep.subr.bf16.mxu0 0
    %314 = vmatpush1.bf16.xpose.msra.mxu0 0
    %315 = vmatprep.subr.bf16.mxu0 0
    %316 = vmatpush1.bf16.xpose.msra.mxu0 0
    %317 = vmatprep.subr.bf16.mxu0 0
    %318 = vmatpush1.bf16.xpose.msra.mxu0 0
    %319 = vmatprep.subr.bf16.mxu0 0
    %320 = vmatpush1.bf16.xpose.msra.mxu0 0
    %321 = vmatprep.subr.bf16.mxu0 0
    %322 = vmatpush1.bf16.xpose.msra.mxu0 0
    %323 = vmatprep.subr.bf16.mxu0 0
    %324 = vmatpush1.bf16.xpose.msra.mxu0 0
    %325 = vmatprep.mubr.bf16.mxu0 0
    %326 = vmatmul.mubr.bf16.gmra.mrb[0].mxu0 %v288
    %v327 = vpop.f32.mrb[0].mxu0
    %v328 = vadd.f32 0.0, %v327
    %v329 = vpop.f32.mrb[0].mxu0
    %v330 = vpop.f32.mrb[0].mxu0
    %v331 = vpop.f32.mrb[0].mxu0
    %332 = vdwg.mxu0
    %333 = vrot.lane.b32.xlu0 %v234, 96
    %v334 = vpop.permute.xlu0 %333
    %v336 = vsel %vm238, %v234, 0
    %v339 = vsel %vm238, %v334, 0
    %341 = vmatprep.subr.bf16.mxu0 0
    %342 = vmatpush1.bf16.xpose.msra.mxu0 %v339
    %343 = vmatprep.subr.bf16.mxu0 0
    %344 = vmatpush1.bf16.xpose.msra.mxu0 0
    %345 = vmatprep.subr.bf16.mxu0 0
    %346 = vmatpush1.bf16.xpose.msra.mxu0 0
    %347 = vmatprep.subr.bf16.mxu0 0
    %348 = vmatpush1.bf16.xpose.msra.mxu0 0
    %349 = vmatprep.subr.bf16.mxu0 0
    %350 = vmatpush1.bf16.xpose.msra.mxu0 0
    %351 = vmatprep.subr.bf16.mxu0 0
    %352 = vmatpush1.bf16.xpose.msra.mxu0 0
    %353 = vmatprep.subr.bf16.mxu0 0
    %354 = vmatpush1.bf16.xpose.msra.mxu0 0
    %355 = vmatprep.subr.bf16.mxu0 0
    %356 = vmatpush1.bf16.xpose.msra.mxu0 0
    %357 = vmatprep.subr.bf16.mxu0 0
    %358 = vmatpush1.bf16.xpose.msra.mxu0 0
    %359 = vmatprep.subr.bf16.mxu0 0
    %360 = vmatpush1.bf16.xpose.msra.mxu0 0
    %361 = vmatprep.subr.bf16.mxu0 0
    %362 = vmatpush1.bf16.xpose.msra.mxu0 0
    %363 = vmatprep.subr.bf16.mxu0 0
    %364 = vmatpush1.bf16.xpose.msra.mxu0 0
    %365 = vmatprep.subr.bf16.mxu0 0
    %366 = vmatpush1.bf16.xpose.msra.mxu0 0
    %367 = vmatprep.subr.bf16.mxu0 0
    %368 = vmatpush1.bf16.xpose.msra.mxu0 0
    %369 = vmatprep.subr.bf16.mxu0 0
    %370 = vmatpush1.bf16.xpose.msra.mxu0 0
    %371 = vmatprep.subr.bf16.mxu0 0
    %372 = vmatpush1.bf16.xpose.msra.mxu0 0
    %373 = vmatprep.mubr.bf16.mxu0 0
    %374 = vmatmul.mubr.bf16.gmra.mrb[0].mxu0 %v336
    %v375 = vpop.f32.mrb[0].mxu0
    %v376 = vadd.f32 0.0, %v375
    %v377 = vpop.f32.mrb[0].mxu0
    %v378 = vpop.f32.mrb[0].mxu0
    %v379 = vpop.f32.mrb[0].mxu0
    %380 = vdwg.mxu0
    %381 = vrot.lane.b32.xlu0 %v235, 96
    %v382 = vpop.permute.xlu0 %381
    %v384 = vsel %vm238, %v235, 0
    %v387 = vsel %vm238, %v382, 0
    %389 = vmatprep.subr.bf16.mxu0 0
    %390 = vmatpush1.bf16.xpose.msra.mxu0 %v387
    %391 = vmatprep.subr.bf16.mxu0 0
    %392 = vmatpush1.bf16.xpose.msra.mxu0 0
    %393 = vmatprep.subr.bf16.mxu0 0
    %394 = vmatpush1.bf16.xpose.msra.mxu0 0
    %395 = vmatprep.subr.bf16.mxu0 0
    %396 = vmatpush1.bf16.xpose.msra.mxu0 0
    %397 = vmatprep.subr.bf16.mxu0 0
    %398 = vmatpush1.bf16.xpose.msra.mxu0 0
    %399 = vmatprep.subr.bf16.mxu0 0
    %400 = vmatpush1.bf16.xpose.msra.mxu0 0
    %401 = vmatprep.subr.bf16.mxu0 0
    %402 = vmatpush1.bf16.xpose.msra.mxu0 0
    %403 = vmatprep.subr.bf16.mxu0 0
    %404 = vmatpush1.bf16.xpose.msra.mxu0 0
    %405 = vmatprep.subr.bf16.mxu0 0
    %406 = vmatpush1.bf16.xpose.msra.mxu0 0
    %407 = vmatprep.subr.bf16.mxu0 0
    %408 = vmatpush1.bf16.xpose.msra.mxu0 0
    %409 = vmatprep.subr.bf16.mxu0 0
    %410 = vmatpush1.bf16.xpose.msra.mxu0 0
    %411 = vmatprep.subr.bf16.mxu0 0
    %412 = vmatpush1.bf16.xpose.msra.mxu0 0
    %413 = vmatprep.subr.bf16.mxu0 0
    %414 = vmatpush1.bf16.xpose.msra.mxu0 0
    %415 = vmatprep.subr.bf16.mxu0 0
    %416 = vmatpush1.bf16.xpose.msra.mxu0 0
    %417 = vmatprep.subr.bf16.mxu0 0
    %418 = vmatpush1.bf16.xpose.msra.mxu0 0
    %419 = vmatprep.subr.bf16.mxu0 0
    %420 = vmatpush1.bf16.xpose.msra.mxu0 0
    %421 = vmatprep.mubr.bf16.mxu0 0
    %422 = vmatmul.mubr.bf16.gmra.mrb[0].mxu0 %v384
    %v423 = vpop.f32.mrb[0].mxu0
    %v424 = vadd.f32 0.0, %v423
    %v425 = vpop.f32.mrb[0].mxu0
    %v426 = vpop.f32.mrb[0].mxu0
    %v427 = vpop.f32.mrb[0].mxu0
    %428 = vdwg.mxu0
    %v429 = vsel %vm238, %v280, -inf
    %430 = vmax.xlane.f32.xlu0 %v429
    %v431 = vpop.xlane.xlu0 %430
    %v432 = vsel %vm238, %v328, -inf
    %433 = vmax.xlane.f32.xlu0 %v432
    %v434 = vpop.xlane.xlu0 %433
    %v435 = vsel %vm238, %v376, -inf
    %436 = vmax.xlane.f32.xlu0 %v435
    %v437 = vpop.xlane.xlu0 %436
    %v438 = vsel %vm238, %v424, -inf
    %439 = vmax.xlane.f32.xlu0 %v438
    %v440 = vpop.xlane.xlu0 %439
    %v441 = vsub.f32 %v280, %v431
    %v442 = vsub.f32 %v328, %v434
    %v443 = vsub.f32 %v376, %v437
    %v444 = vsub.f32 %v424, %v440
    %v445 = vmul.f32 %v441, 1.442695
    %v446 = vpow.pop %v445
    %v447 = vmul.f32 %v442, 1.442695
    %v448 = vpow.pop %v447
    %v449 = vmul.f32 %v443, 1.442695
    %v450 = vpow.pop %v449
    %v451 = vmul.f32 %v444, 1.442695
    %v452 = vpow.pop %v451
    %v453 = vsel %vm238, %v446, 0.0
    %454 = vadd.xlane.f32.xlu0 %v453
    %v455 = vpop.xlane.xlu0 %454
    %v456 = vsel %vm238, %v448, 0.0
    %457 = vadd.xlane.f32.xlu0 %v456
    %v458 = vpop.xlane.xlu0 %457
    %v459 = vsel %vm238, %v450, 0.0
    %460 = vadd.xlane.f32.xlu0 %v459
    %v461 = vpop.xlane.xlu0 %460
    %v462 = vsel %vm238, %v452, 0.0
    %463 = vadd.xlane.f32.xlu0 %v462
    %v464 = vpop.xlane.xlu0 %463
    %v465 = vrcp.pop %v455
    %v466 = vrcp.pop %v458
    %v467 = vrcp.pop %v461
    %v468 = vrcp.pop %v464
    %v469 = vmul.f32 %v446, %v465
    %v470 = vmul.f32 %v448, %v466
    %v471 = vmul.f32 %v450, %v467
    %v472 = vmul.f32 %v452, %v468
    %v473 = vpack.c.bf16 %v469, %v469
    %v474 = vpack.c.bf16 %v470, %v470
    %v475 = vpack.c.bf16 %v471, %v471
    %v476 = vpack.c.bf16 %v472, %v472
    %477 = vrot.lane.b32.xlu0 %v232, 64
    %v478 = vpop.permute.xlu0 %477
    %v480 = vsel %vm238, %v473, 0
    %vm482 = vcmask 1043456
    %v484 = vsel %vm482, %v478, 0
    %486 = vmatprep.subr.bf16.mxu0 0
    %487 = vmatpush1.bf16.msra.mxu0 %v484
    %488 = vmatprep.subr.bf16.mxu0 0
    %489 = vmatpush1.bf16.msra.mxu0 0
    %490 = vmatprep.subr.bf16.mxu0 0
    %491 = vmatpush1.bf16.msra.mxu0 0
    %492 = vmatprep.subr.bf16.mxu0 0
    %493 = vmatpush1.bf16.msra.mxu0 0
    %494 = vmatprep.subr.bf16.mxu0 0
    %495 = vmatpush1.bf16.msra.mxu0 0
    %496 = vmatprep.subr.bf16.mxu0 0
    %497 = vmatpush1.bf16.msra.mxu0 0
    %498 = vmatprep.subr.bf16.mxu0 0
    %499 = vmatpush1.bf16.msra.mxu0 0
    %500 = vmatprep.subr.bf16.mxu0 0
    %501 = vmatpush1.bf16.msra.mxu0 0
    %502 = vmatprep.subr.bf16.mxu0 0
    %503 = vmatpush1.bf16.msra.mxu0 0
    %504 = vmatprep.subr.bf16.mxu0 0
    %505 = vmatpush1.bf16.msra.mxu0 0
    %506 = vmatprep.subr.bf16.mxu0 0
    %507 = vmatpush1.bf16.msra.mxu0 0
    %508 = vmatprep.subr.bf16.mxu0 0
    %509 = vmatpush1.bf16.msra.mxu0 0
    %510 = vmatprep.subr.bf16.mxu0 0
    %511 = vmatpush1.bf16.msra.mxu0 0
    %512 = vmatprep.subr.bf16.mxu0 0
    %513 = vmatpush1.bf16.msra.mxu0 0
    %514 = vmatprep.subr.bf16.mxu0 0
    %515 = vmatpush1.bf16.msra.mxu0 0
    %516 = vmatprep.subr.bf16.mxu0 0
    %517 = vmatpush1.bf16.msra.mxu0 0
    %518 = vmatprep.mubr.bf16.mxu0 0
    %519 = vmatmul.mubr.bf16.gmra.mrb[0].mxu0 %v480
    %v520 = vpop.f32.mrb[0].mxu0
    %v521 = vadd.f32 0.0, %v520
    %v522 = vpop.f32.mrb[0].mxu0
    %v523 = vpop.f32.mrb[0].mxu0
    %v524 = vpop.f32.mrb[0].mxu0
    %525 = vdwg.mxu0
    %526 = vrot.lane.b32.xlu0 %v233, 64
    %v527 = vpop.permute.xlu0 %526
    %v529 = vsel %vm238, %v474, 0
    %v532 = vsel %vm482, %v527, 0
    %534 = vmatprep.subr.bf16.mxu0 0
    %535 = vmatpush1.bf16.msra.mxu0 %v532
    %536 = vmatprep.subr.bf16.mxu0 0
    %537 = vmatpush1.bf16.msra.mxu0 0
    %538 = vmatprep.subr.bf16.mxu0 0
    %539 = vmatpush1.bf16.msra.mxu0 0
    %540 = vmatprep.subr.bf16.mxu0 0
    %541 = vmatpush1.bf16.msra.mxu0 0
    %542 = vmatprep.subr.bf16.mxu0 0
    %543 = vmatpush1.bf16.msra.mxu0 0
    %544 = vmatprep.subr.bf16.mxu0 0
    %545 = vmatpush1.bf16.msra.mxu0 0
    %546 = vmatprep.subr.bf16.mxu0 0
    %547 = vmatpush1.bf16.msra.mxu0 0
    %548 = vmatprep.subr.bf16.mxu0 0
    %549 = vmatpush1.bf16.msra.mxu0 0
    %550 = vmatprep.subr.bf16.mxu0 0
    %551 = vmatpush1.bf16.msra.mxu0 0
    %552 = vmatprep.subr.bf16.mxu0 0
    %553 = vmatpush1.bf16.msra.mxu0 0
    %554 = vmatprep.subr.bf16.mxu0 0
    %555 = vmatpush1.bf16.msra.mxu0 0
    %556 = vmatprep.subr.bf16.mxu0 0
    %557 = vmatpush1.bf16.msra.mxu0 0
    %558 = vmatprep.subr.bf16.mxu0 0
    %559 = vmatpush1.bf16.msra.mxu0 0
    %560 = vmatprep.subr.bf16.mxu0 0
    %561 = vmatpush1.bf16.msra.mxu0 0
    %562 = vmatprep.subr.bf16.mxu0 0
    %563 = vmatpush1.bf16.msra.mxu0 0
    %564 = vmatprep.subr.bf16.mxu0 0
    %565 = vmatpush1.bf16.msra.mxu0 0
    %566 = vmatprep.mubr.bf16.mxu0 0
    %567 = vmatmul.mubr.bf16.gmra.mrb[0].mxu0 %v529
    %v568 = vpop.f32.mrb[0].mxu0
    %v569 = vadd.f32 0.0, %v568
    %v570 = vpop.f32.mrb[0].mxu0
    %v571 = vpop.f32.mrb[0].mxu0
    %v572 = vpop.f32.mrb[0].mxu0
    %573 = vdwg.mxu0
    %574 = vrot.lane.b32.xlu0 %v234, 64
    %v575 = vpop.permute.xlu0 %574
    %v577 = vsel %vm238, %v475, 0
    %v580 = vsel %vm482, %v575, 0
    %582 = vmatprep.subr.bf16.mxu0 0
    %583 = vmatpush1.bf16.msra.mxu0 %v580
    %584 = vmatprep.subr.bf16.mxu0 0
    %585 = vmatpush1.bf16.msra.mxu0 0
    %586 = vmatprep.subr.bf16.mxu0 0
    %587 = vmatpush1.bf16.msra.mxu0 0
    %588 = vmatprep.subr.bf16.mxu0 0
    %589 = vmatpush1.bf16.msra.mxu0 0
    %590 = vmatprep.subr.bf16.mxu0 0
    %591 = vmatpush1.bf16.msra.mxu0 0
    %592 = vmatprep.subr.bf16.mxu0 0
    %593 = vmatpush1.bf16.msra.mxu0 0
    %594 = vmatprep.subr.bf16.mxu0 0
    %595 = vmatpush1.bf16.msra.mxu0 0
    %596 = vmatprep.subr.bf16.mxu0 0
    %597 = vmatpush1.bf16.msra.mxu0 0
    %598 = vmatprep.subr.bf16.mxu0 0
    %599 = vmatpush1.bf16.msra.mxu0 0
    %600 = vmatprep.subr.bf16.mxu0 0
    %601 = vmatpush1.bf16.msra.mxu0 0
    %602 = vmatprep.subr.bf16.mxu0 0
    %603 = vmatpush1.bf16.msra.mxu0 0
    %604 = vmatprep.subr.bf16.mxu0 0
    %605 = vmatpush1.bf16.msra.mxu0 0
    %606 = vmatprep.subr.bf16.mxu0 0
    %607 = vmatpush1.bf16.msra.mxu0 0
    %608 = vmatprep.subr.bf16.mxu0 0
    %609 = vmatpush1.bf16.msra.mxu0 0
    %610 = vmatprep.subr.bf16.mxu0 0
    %611 = vmatpush1.bf16.msra.mxu0 0
    %612 = vmatprep.subr.bf16.mxu0 0
    %613 = vmatpush1.bf16.msra.mxu0 0
    %614 = vmatprep.mubr.bf16.mxu0 0
    %615 = vmatmul.mubr.bf16.gmra.mrb[0].mxu0 %v577
    %v616 = vpop.f32.mrb[0].mxu0
    %v617 = vadd.f32 0.0, %v616
    %v618 = vpop.f32.mrb[0].mxu0
    %v619 = vpop.f32.mrb[0].mxu0
    %v620 = vpop.f32.mrb[0].mxu0
    %621 = vdwg.mxu0
    %622 = vrot.lane.b32.xlu0 %v235, 64
    %v623 = vpop.permute.xlu0 %622
    %v625 = vsel %vm238, %v476, 0
    %v628 = vsel %vm482, %v623, 0
    %630 = vmatprep.subr.bf16.mxu0 0
    %631 = vmatpush1.bf16.msra.mxu0 %v628
    %632 = vmatprep.subr.bf16.mxu0 0
    %633 = vmatpush1.bf16.msra.mxu0 0
    %634 = vmatprep.subr.bf16.mxu0 0
    %635 = vmatpush1.bf16.msra.mxu0 0
    %636 = vmatprep.subr.bf16.mxu0 0
    %637 = vmatpush1.bf16.msra.mxu0 0
    %638 = vmatprep.subr.bf16.mxu0 0
    %639 = vmatpush1.bf16.msra.mxu0 0
    %640 = vmatprep.subr.bf16.mxu0 0
    %641 = vmatpush1.bf16.msra.mxu0 0
    %642 = vmatprep.subr.bf16.mxu0 0
    %643 = vmatpush1.bf16.msra.mxu0 0
    %644 = vmatprep.subr.bf16.mxu0 0
    %645 = vmatpush1.bf16.msra.mxu0 0
    %646 = vmatprep.subr.bf16.mxu0 0
    %647 = vmatpush1.bf16.msra.mxu0 0
    %648 = vmatprep.subr.bf16.mxu0 0
    %649 = vmatpush1.bf16.msra.mxu0 0
    %650 = vmatprep.subr.bf16.mxu0 0
    %651 = vmatpush1.bf16.msra.mxu0 0
    %652 = vmatprep.subr.bf16.mxu0 0
    %653 = vmatpush1.bf16.msra.mxu0 0
    %654 = vmatprep.subr.bf16.mxu0 0
    %655 = vmatpush1.bf16.msra.mxu0 0
    %656 = vmatprep.subr.bf16.mxu0 0
    %657 = vmatpush1.bf16.msra.mxu0 0
    %658 = vmatprep.subr.bf16.mxu0 0
    %659 = vmatpush1.bf16.msra.mxu0 0
    %660 = vmatprep.subr.bf16.mxu0 0
    %661 = vmatpush1.bf16.msra.mxu0 0
    %662 = vmatprep.mubr.bf16.mxu0 0
    %663 = vmatmul.mubr.bf16.gmra.mrb[0].mxu0 %v625
    %v664 = vpop.f32.mrb[0].mxu0
    %v665 = vadd.f32 0.0, %v664
    %v666 = vpop.f32.mrb[0].mxu0
    %v667 = vpop.f32.mrb[0].mxu0
    %v668 = vpop.f32.mrb[0].mxu0
    %669 = vdwg.mxu0
    %v670 = vpack.c.bf16 %v569, %v521
    %v671 = vpack.c.bf16 %v665, %v617
    %v672 = vld [vmem:[#allocation2] sm:$0xf]
    %673 = vrot.lane.b32.xlu0 %v232, 120
    %v674 = vpop.permute.xlu0 %673
    %675 = vrot.lane.b32.xlu0 %v232, 88
    %v676 = vpop.permute.xlu0 %675
    %v678 = vsel %vm238, %v674, 0
    %v681 = vsel %vm238, %v676, 0
    %683 = vmatprep.subr.bf16.mxu0 0
    %684 = vmatpush1.bf16.xpose.msra.mxu0 %v681
    %685 = vmatprep.subr.bf16.mxu0 0
    %686 = vmatpush1.bf16.xpose.msra.mxu0 0
    %687 = vmatprep.subr.bf16.mxu0 0
    %688 = vmatpush1.bf16.xpose.msra.mxu0 0
    %689 = vmatprep.subr.bf16.mxu0 0
    %690 = vmatpush1.bf16.xpose.msra.mxu0 0
    %691 = vmatprep.subr.bf16.mxu0 0
    %692 = vmatpush1.bf16.xpose.msra.mxu0 0
    %693 = vmatprep.subr.bf16.mxu0 0
    %694 = vmatpush1.bf16.xpose.msra.mxu0 0
    %695 = vmatprep.subr.bf16.mxu0 0
    %696 = vmatpush1.bf16.xpose.msra.mxu0 0
    %697 = vmatprep.subr.bf16.mxu0 0
    %698 = vmatpush1.bf16.xpose.msra.mxu0 0
    %699 = vmatprep.subr.bf16.mxu0 0
    %700 = vmatpush1.bf16.xpose.msra.mxu0 0
    %701 = vmatprep.subr.bf16.mxu0 0
    %702 = vmatpush1.bf16.xpose.msra.mxu0 0
    %703 = vmatprep.subr.bf16.mxu0 0
    %704 = vmatpush1.bf16.xpose.msra.mxu0 0
    %705 = vmatprep.subr.bf16.mxu0 0
    %706 = vmatpush1.bf16.xpose.msra.mxu0 0
    %707 = vmatprep.subr.bf16.mxu0 0
    %708 = vmatpush1.bf16.xpose.msra.mxu0 0
    %709 = vmatprep.subr.bf16.mxu0 0
    %710 = vmatpush1.bf16.xpose.msra.mxu0 0
    %711 = vmatprep.subr.bf16.mxu0 0
    %712 = vmatpush1.bf16.xpose.msra.mxu0 0
    %713 = vmatprep.subr.bf16.mxu0 0
    %714 = vmatpush1.bf16.xpose.msra.mxu0 0
    %715 = vmatprep.mubr.bf16.mxu0 0
    %716 = vmatmul.mubr.bf16.gmra.mrb[0].mxu0 %v678
    %v717 = vpop.f32.mrb[0].mxu0
    %v718 = vadd.f32 0.0, %v717
    %v719 = vpop.f32.mrb[0].mxu0
    %v720 = vpop.f32.mrb[0].mxu0
    %v721 = vpop.f32.mrb[0].mxu0
    %722 = vdwg.mxu0
    %723 = vrot.lane.b32.xlu0 %v233, 120
    %v724 = vpop.permute.xlu0 %723
    %725 = vrot.lane.b32.xlu0 %v233, 88
    %v726 = vpop.permute.xlu0 %725
    %v728 = vsel %vm238, %v724, 0
    %v731 = vsel %vm238, %v726, 0
    %733 = vmatprep.subr.bf16.mxu0 0
    %734 = vmatpush1.bf16.xpose.msra.mxu0 %v731
    %735 = vmatprep.subr.bf16.mxu0 0
    %736 = vmatpush1.bf16.xpose.msra.mxu0 0
    %737 = vmatprep.subr.bf16.mxu0 0
    %738 = vmatpush1.bf16.xpose.msra.mxu0 0
    %739 = vmatprep.subr.bf16.mxu0 0
    %740 = vmatpush1.bf16.xpose.msra.mxu0 0
    %741 = vmatprep.subr.bf16.mxu0 0
    %742 = vmatpush1.bf16.xpose.msra.mxu0 0
    %743 = vmatprep.subr.bf16.mxu0 0
    %744 = vmatpush1.bf16.xpose.msra.mxu0 0
    %745 = vmatprep.subr.bf16.mxu0 0
    %746 = vmatpush1.bf16.xpose.msra.mxu0 0
    %747 = vmatprep.subr.bf16.mxu0 0
    %748 = vmatpush1.bf16.xpose.msra.mxu0 0
    %749 = vmatprep.subr.bf16.mxu0 0
    %750 = vmatpush1.bf16.xpose.msra.mxu0 0
    %751 = vmatprep.subr.bf16.mxu0 0
    %752 = vmatpush1.bf16.xpose.msra.mxu0 0
    %753 = vmatprep.subr.bf16.mxu0 0
    %754 = vmatpush1.bf16.xpose.msra.mxu0 0
    %755 = vmatprep.subr.bf16.mxu0 0
    %756 = vmatpush1.bf16.xpose.msra.mxu0 0
    %757 = vmatprep.subr.bf16.mxu0 0
    %758 = vmatpush1.bf16.xpose.msra.mxu0 0
    %759 = vmatprep.subr.bf16.mxu0 0
    %760 = vmatpush1.bf16.xpose.msra.mxu0 0
    %761 = vmatprep.subr.bf16.mxu0 0
    %762 = vmatpush1.bf16.xpose.msra.mxu0 0
    %763 = vmatprep.subr.bf16.mxu0 0
    %764 = vmatpush1.bf16.xpose.msra.mxu0 0
    %765 = vmatprep.mubr.bf16.mxu0 0
    %766 = vmatmul.mubr.bf16.gmra.mrb[0].mxu0 %v728
    %v767 = vpop.f32.mrb[0].mxu0
    %v768 = vadd.f32 0.0, %v767
    %v769 = vpop.f32.mrb[0].mxu0
    %v770 = vpop.f32.mrb[0].mxu0
    %v771 = vpop.f32.mrb[0].mxu0
    %772 = vdwg.mxu0
    %773 = vrot.lane.b32.xlu0 %v234, 120
    %v774 = vpop.permute.xlu0 %773
    %775 = vrot.lane.b32.xlu0 %v234, 88
    %v776 = vpop.permute.xlu0 %775
    %v778 = vsel %vm238, %v774, 0
    %v781 = vsel %vm238, %v776, 0
    %783 = vmatprep.subr.bf16.mxu0 0
    %784 = vmatpush1.bf16.xpose.msra.mxu0 %v781
    %785 = vmatprep.subr.bf16.mxu0 0
    %786 = vmatpush1.bf16.xpose.msra.mxu0 0
    %787 = vmatprep.subr.bf16.mxu0 0
    %788 = vmatpush1.bf16.xpose.msra.mxu0 0
    %789 = vmatprep.subr.bf16.mxu0 0
    %790 = vmatpush1.bf16.xpose.msra.mxu0 0
    %791 = vmatprep.subr.bf16.mxu0 0
    %792 = vmatpush1.bf16.xpose.msra.mxu0 0
    %793 = vmatprep.subr.bf16.mxu0 0
    %794 = vmatpush1.bf16.xpose.msra.mxu0 0
    %795 = vmatprep.subr.bf16.mxu0 0
    %796 = vmatpush1.bf16.xpose.msra.mxu0 0
    %797 = vmatprep.subr.bf16.mxu0 0
    %798 = vmatpush1.bf16.xpose.msra.mxu0 0
    %799 = vmatprep.subr.bf16.mxu0 0
    %800 = vmatpush1.bf16.xpose.msra.mxu0 0
    %801 = vmatprep.subr.bf16.mxu0 0
    %802 = vmatpush1.bf16.xpose.msra.mxu0 0
    %803 = vmatprep.subr.bf16.mxu0 0
    %804 = vmatpush1.bf16.xpose.msra.mxu0 0
    %805 = vmatprep.subr.bf16.mxu0 0
    %806 = vmatpush1.bf16.xpose.msra.mxu0 0
    %807 = vmatprep.subr.bf16.mxu0 0
    %808 = vmatpush1.bf16.xpose.msra.mxu0 0
    %809 = vmatprep.subr.bf16.mxu0 0
    %810 = vmatpush1.bf16.xpose.msra.mxu0 0
    %811 = vmatprep.subr.bf16.mxu0 0
    %812 = vmatpush1.bf16.xpose.msra.mxu0 0
    %813 = vmatprep.subr.bf16.mxu0 0
    %814 = vmatpush1.bf16.xpose.msra.mxu0 0
    %815 = vmatprep.mubr.bf16.mxu0 0
    %816 = vmatmul.mubr.bf16.gmra.mrb[0].mxu0 %v778
    %v817 = vpop.f32.mrb[0].mxu0
    %v818 = vadd.f32 0.0, %v817
    %v819 = vpop.f32.mrb[0].mxu0
    %v820 = vpop.f32.mrb[0].mxu0
    %v821 = vpop.f32.mrb[0].mxu0
    %822 = vdwg.mxu0
    %823 = vrot.lane.b32.xlu0 %v235, 120
    %v824 = vpop.permute.xlu0 %823
    %825 = vrot.lane.b32.xlu0 %v235, 88
    %v826 = vpop.permute.xlu0 %825
    %v828 = vsel %vm238, %v824, 0
    %v831 = vsel %vm238, %v826, 0
    %833 = vmatprep.subr.bf16.mxu0 0
    %834 = vmatpush1.bf16.xpose.msra.mxu0 %v831
    %835 = vmatprep.subr.bf16.mxu0 0
    %836 = vmatpush1.bf16.xpose.msra.mxu0 0
    %837 = vmatprep.subr.bf16.mxu0 0
    %838 = vmatpush1.bf16.xpose.msra.mxu0 0
    %839 = vmatprep.subr.bf16.mxu0 0
    %840 = vmatpush1.bf16.xpose.msra.mxu0 0
    %841 = vmatprep.subr.bf16.mxu0 0
    %842 = vmatpush1.bf16.xpose.msra.mxu0 0
    %843 = vmatprep.subr.bf16.mxu0 0
    %844 = vmatpush1.bf16.xpose.msra.mxu0 0
    %845 = vmatprep.subr.bf16.mxu0 0
    %846 = vmatpush1.bf16.xpose.msra.mxu0 0
    %847 = vmatprep.subr.bf16.mxu0 0
    %848 = vmatpush1.bf16.xpose.msra.mxu0 0
    %849 = vmatprep.subr.bf16.mxu0 0
    %850 = vmatpush1.bf16.xpose.msra.mxu0 0
    %851 = vmatprep.subr.bf16.mxu0 0
    %852 = vmatpush1.bf16.xpose.msra.mxu0 0
    %853 = vmatprep.subr.bf16.mxu0 0
    %854 = vmatpush1.bf16.xpose.msra.mxu0 0
    %855 = vmatprep.subr.bf16.mxu0 0
    %856 = vmatpush1.bf16.xpose.msra.mxu0 0
    %857 = vmatprep.subr.bf16.mxu0 0
    %858 = vmatpush1.bf16.xpose.msra.mxu0 0
    %859 = vmatprep.subr.bf16.mxu0 0
    %860 = vmatpush1.bf16.xpose.msra.mxu0 0
    %861 = vmatprep.subr.bf16.mxu0 0
    %862 = vmatpush1.bf16.xpose.msra.mxu0 0
    %863 = vmatprep.subr.bf16.mxu0 0
    %864 = vmatpush1.bf16.xpose.msra.mxu0 0
    %865 = vmatprep.mubr.bf16.mxu0 0
    %866 = vmatmul.mubr.bf16.gmra.mrb[0].mxu0 %v828
    %v867 = vpop.f32.mrb[0].mxu0
    %v868 = vadd.f32 0.0, %v867
    %v869 = vpop.f32.mrb[0].mxu0
    %v870 = vpop.f32.mrb[0].mxu0
    %v871 = vpop.f32.mrb[0].mxu0
    %872 = vdwg.mxu0
    %v873 = vsel %vm238, %v718, -inf
    %874 = vmax.xlane.f32.xlu0 %v873
    %v875 = vpop.xlane.xlu0 %874
    %v876 = vsel %vm238, %v768, -inf
    %877 = vmax.xlane.f32.xlu0 %v876
    %v878 = vpop.xlane.xlu0 %877
    %v879 = vsel %vm238, %v818, -inf
    %880 = vmax.xlane.f32.xlu0 %v879
    %v881 = vpop.xlane.xlu0 %880
    %v882 = vsel %vm238, %v868, -inf
    %883 = vmax.xlane.f32.xlu0 %v882
    %v884 = vpop.xlane.xlu0 %883
    %v885 = vsub.f32 %v718, %v875
    %v886 = vsub.f32 %v768, %v878
    %v887 = vsub.f32 %v818, %v881
    %v888 = vsub.f32 %v868, %v884
    %v889 = vmul.f32 %v885, 1.442695
    %v890 = vpow.pop %v889
    %v891 = vmul.f32 %v886, 1.442695
    %v892 = vpow.pop %v891
    %v893 = vmul.f32 %v887, 1.442695
    %v894 = vpow.pop %v893
    %v895 = vmul.f32 %v888, 1.442695
    %v896 = vpow.pop %v895
    %v897 = vsel %vm238, %v890, 0.0
    %898 = vadd.xlane.f32.xlu0 %v897
    %v899 = vpop.xlane.xlu0 %898
    %v900 = vsel %vm238, %v892, 0.0
    %901 = vadd.xlane.f32.xlu0 %v900
    %v902 = vpop.xlane.xlu0 %901
    %v903 = vsel %vm238, %v894, 0.0
    %904 = vadd.xlane.f32.xlu0 %v903
    %v905 = vpop.xlane.xlu0 %904
    %v906 = vsel %vm238, %v896, 0.0
    %907 = vadd.xlane.f32.xlu0 %v906
    %v908 = vpop.xlane.xlu0 %907
    %v909 = vrcp.pop %v899
    %v910 = vrcp.pop %v902
    %v911 = vrcp.pop %v905
    %v912 = vrcp.pop %v908
    %v913 = vmul.f32 %v890, %v909
    %v914 = vmul.f32 %v892, %v910
    %v915 = vmul.f32 %v894, %v911
    %v916 = vmul.f32 %v896, %v912
    %v917 = vpack.c.bf16 %v913, %v913
    %v918 = vpack.c.bf16 %v914, %v914
    %v919 = vpack.c.bf16 %v915, %v915
    %v920 = vpack.c.bf16 %v916, %v916
    %921 = vrot.lane.b32.xlu0 %v232, 56
    %v922 = vpop.permute.xlu0 %921
    %v924 = vsel %vm238, %v917, 0
    %v927 = vsel %vm482, %v922, 0
    %929 = vmatprep.subr.bf16.mxu0 0
    %930 = vmatpush1.bf16.msra.mxu0 %v927
    %931 = vmatprep.subr.bf16.mxu0 0
    %932 = vmatpush1.bf16.msra.mxu0 0
    %933 = vmatprep.subr.bf16.mxu0 0
    %934 = vmatpush1.bf16.msra.mxu0 0
    %935 = vmatprep.subr.bf16.mxu0 0
    %936 = vmatpush1.bf16.msra.mxu0 0
    %937 = vmatprep.subr.bf16.mxu0 0
    %938 = vmatpush1.bf16.msra.mxu0 0
    %939 = vmatprep.subr.bf16.mxu0 0
    %940 = vmatpush1.bf16.msra.mxu0 0
    %941 = vmatprep.subr.bf16.mxu0 0
    %942 = vmatpush1.bf16.msra.mxu0 0
    %943 = vmatprep.subr.bf16.mxu0 0
    %944 = vmatpush1.bf16.msra.mxu0 0
    %945 = vmatprep.subr.bf16.mxu0 0
    %946 = vmatpush1.bf16.msra.mxu0 0
    %947 = vmatprep.subr.bf16.mxu0 0
    %948 = vmatpush1.bf16.msra.mxu0 0
    %949 = vmatprep.subr.bf16.mxu0 0
    %950 = vmatpush1.bf16.msra.mxu0 0
    %951 = vmatprep.subr.bf16.mxu0 0
    %952 = vmatpush1.bf16.msra.mxu0 0
    %953 = vmatprep.subr.bf16.mxu0 0
    %954 = vmatpush1.bf16.msra.mxu0 0
    %955 = vmatprep.subr.bf16.mxu0 0
    %956 = vmatpush1.bf16.msra.mxu0 0
    %957 = vmatprep.subr.bf16.mxu0 0
    %958 = vmatpush1.bf16.msra.mxu0 0
    %959 = vmatprep.subr.bf16.mxu0 0
    %960 = vmatpush1.bf16.msra.mxu0 0
    %961 = vmatprep.mubr.bf16.mxu0 0
    %962 = vmatmul.mubr.bf16.gmra.mrb[0].mxu0 %v924
    %v963 = vpop.f32.mrb[0].mxu0
    %v964 = vadd.f32 0.0, %v963
    %v965 = vpop.f32.mrb[0].mxu0
    %v966 = vpop.f32.mrb[0].mxu0
    %v967 = vpop.f32.mrb[0].mxu0
    %968 = vdwg.mxu0
    %969 = vrot.lane.b32.xlu0 %v233, 56
    %v970 = vpop.permute.xlu0 %969
    %v972 = vsel %vm238, %v918, 0
    %v975 = vsel %vm482, %v970, 0
    %977 = vmatprep.subr.bf16.mxu0 0
    %978 = vmatpush1.bf16.msra.mxu0 %v975
    %979 = vmatprep.subr.bf16.mxu0 0
    %980 = vmatpush1.bf16.msra.mxu0 0
    %981 = vmatprep.subr.bf16.mxu0 0
    %982 = vmatpush1.bf16.msra.mxu0 0
    %983 = vmatprep.subr.bf16.mxu0 0
    %984 = vmatpush1.bf16.msra.mxu0 0
    %985 = vmatprep.subr.bf16.mxu0 0
    %986 = vmatpush1.bf16.msra.mxu0 0
    %987 = vmatprep.subr.bf16.mxu0 0
    %988 = vmatpush1.bf16.msra.mxu0 0
    %989 = vmatprep.subr.bf16.mxu0 0
    %990 = vmatpush1.bf16.msra.mxu0 0
    %991 = vmatprep.subr.bf16.mxu0 0
    %992 = vmatpush1.bf16.msra.mxu0 0
    %993 = vmatprep.subr.bf16.mxu0 0
    %994 = vmatpush1.bf16.msra.mxu0 0
    %995 = vmatprep.subr.bf16.mxu0 0
    %996 = vmatpush1.bf16.msra.mxu0 0
    %997 = vmatprep.subr.bf16.mxu0 0
    %998 = vmatpush1.bf16.msra.mxu0 0
    %999 = vmatprep.subr.bf16.mxu0 0
    %1000 = vmatpush1.bf16.msra.mxu0 0
    %1001 = vmatprep.subr.bf16.mxu0 0
    %1002 = vmatpush1.bf16.msra.mxu0 0
    %1003 = vmatprep.subr.bf16.mxu0 0
    %1004 = vmatpush1.bf16.msra.mxu0 0
    %1005 = vmatprep.subr.bf16.mxu0 0
    %1006 = vmatpush1.bf16.msra.mxu0 0
    %1007 = vmatprep.subr.bf16.mxu0 0
    %1008 = vmatpush1.bf16.msra.mxu0 0
    %1009 = vmatprep.mubr.bf16.mxu0 0
    %1010 = vmatmul.mubr.bf16.gmra.mrb[0].mxu0 %v972
    %v1011 = vpop.f32.mrb[0].mxu0
    %v1012 = vadd.f32 0.0, %v1011
    %v1013 = vpop.f32.mrb[0].mxu0
    %v1014 = vpop.f32.mrb[0].mxu0
    %v1015 = vpop.f32.mrb[0].mxu0
    %1016 = vdwg.mxu0
    %1017 = vrot.lane.b32.xlu0 %v234, 56
    %v1018 = vpop.permute.xlu0 %1017
    %v1020 = vsel %vm238, %v919, 0
    %v1023 = vsel %vm482, %v1018, 0
    %1025 = vmatprep.subr.bf16.mxu0 0
    %1026 = vmatpush1.bf16.msra.mxu0 %v1023
    %1027 = vmatprep.subr.bf16.mxu0 0
    %1028 = vmatpush1.bf16.msra.mxu0 0
    %1029 = vmatprep.subr.bf16.mxu0 0
    %1030 = vmatpush1.bf16.msra.mxu0 0
    %1031 = vmatprep.subr.bf16.mxu0 0
    %1032 = vmatpush1.bf16.msra.mxu0 0
    %1033 = vmatprep.subr.bf16.mxu0 0
    %1034 = vmatpush1.bf16.msra.mxu0 0
    %1035 = vmatprep.subr.bf16.mxu0 0
    %1036 = vmatpush1.bf16.msra.mxu0 0
    %1037 = vmatprep.subr.bf16.mxu0 0
    %1038 = vmatpush1.bf16.msra.mxu0 0
    %1039 = vmatprep.subr.bf16.mxu0 0
    %1040 = vmatpush1.bf16.msra.mxu0 0
    %1041 = vmatprep.subr.bf16.mxu0 0
    %1042 = vmatpush1.bf16.msra.mxu0 0
    %1043 = vmatprep.subr.bf16.mxu0 0
    %1044 = vmatpush1.bf16.msra.mxu0 0
    %1045 = vmatprep.subr.bf16.mxu0 0
    %1046 = vmatpush1.bf16.msra.mxu0 0
    %1047 = vmatprep.subr.bf16.mxu0 0
    %1048 = vmatpush1.bf16.msra.mxu0 0
    %1049 = vmatprep.subr.bf16.mxu0 0
    %1050 = vmatpush1.bf16.msra.mxu0 0
    %1051 = vmatprep.subr.bf16.mxu0 0
    %1052 = vmatpush1.bf16.msra.mxu0 0
    %1053 = vmatprep.subr.bf16.mxu0 0
    %1054 = vmatpush1.bf16.msra.mxu0 0
    %1055 = vmatprep.subr.bf16.mxu0 0
    %1056 = vmatpush1.bf16.msra.mxu0 0
    %1057 = vmatprep.mubr.bf16.mxu0 0
    %1058 = vmatmul.mubr.bf16.gmra.mrb[0].mxu0 %v1020
    %v1059 = vpop.f32.mrb[0].mxu0
    %v1060 = vadd.f32 0.0, %v1059
    %v1061 = vpop.f32.mrb[0].mxu0
    %v1062 = vpop.f32.mrb[0].mxu0
    %v1063 = vpop.f32.mrb[0].mxu0
    %1064 = vdwg.mxu0
    %1065 = vrot.lane.b32.xlu0 %v235, 56
    %v1066 = vpop.permute.xlu0 %1065
    %v1068 = vsel %vm238, %v920, 0
    %v1071 = vsel %vm482, %v1066, 0
    %1073 = vmatprep.subr.bf16.mxu0 0
    %1074 = vmatpush1.bf16.msra.mxu0 %v1071
    %1075 = vmatprep.subr.bf16.mxu0 0
    %1076 = vmatpush1.bf16.msra.mxu0 0
    %1077 = vmatprep.subr.bf16.mxu0 0
    %1078 = vmatpush1.bf16.msra.mxu0 0
    %1079 = vmatprep.subr.bf16.mxu0 0
    %1080 = vmatpush1.bf16.msra.mxu0 0
    %1081 = vmatprep.subr.bf16.mxu0 0
    %1082 = vmatpush1.bf16.msra.mxu0 0
    %1083 = vmatprep.subr.bf16.mxu0 0
    %1084 = vmatpush1.bf16.msra.mxu0 0
    %1085 = vmatprep.subr.bf16.mxu0 0
    %1086 = vmatpush1.bf16.msra.mxu0 0
    %1087 = vmatprep.subr.bf16.mxu0 0
    %1088 = vmatpush1.bf16.msra.mxu0 0
    %1089 = vmatprep.subr.bf16.mxu0 0
    %1090 = vmatpush1.bf16.msra.mxu0 0
    %1091 = vmatprep.subr.bf16.mxu0 0
    %1092 = vmatpush1.bf16.msra.mxu0 0
    %1093 = vmatprep.subr.bf16.mxu0 0
    %1094 = vmatpush1.bf16.msra.mxu0 0
    %1095 = vmatprep.subr.bf16.mxu0 0
    %1096 = vmatpush1.bf16.msra.mxu0 0
    %1097 = vmatprep.subr.bf16.mxu0 0
    %1098 = vmatpush1.bf16.msra.mxu0 0
    %1099 = vmatprep.subr.bf16.mxu0 0
    %1100 = vmatpush1.bf16.msra.mxu0 0
    %1101 = vmatprep.subr.bf16.mxu0 0
    %1102 = vmatpush1.bf16.msra.mxu0 0
    %1103 = vmatprep.subr.bf16.mxu0 0
    %1104 = vmatpush1.bf16.msra.mxu0 0
    %1105 = vmatprep.mubr.bf16.mxu0 0
    %1106 = vmatmul.mubr.bf16.gmra.mrb[0].mxu0 %v1068
    %v1107 = vpop.f32.mrb[0].mxu0
    %v1108 = vadd.f32 0.0, %v1107
    %v1109 = vpop.f32.mrb[0].mxu0
    %v1110 = vpop.f32.mrb[0].mxu0
    %v1111 = vpop.f32.mrb[0].mxu0
    %1112 = vdwg.mxu0
    %v1113 = vpack.c.bf16 %v1012, %v964
    %v1114 = vpack.c.bf16 %v1108, %v1060
    %v1115 = vld [vmem:[#allocation2 + $0x4] sm:$0xf]
    %v1117 = vsel %vm238, %v1113, 0
    %v1120 = vsel %vm238, %v1114, 0
    %v1123 = vsel %vm482, %v1115, 0
    %1125 = vmatprep.subr.bf16.mxu0 0
    %1126 = vmatpush1.bf16.msra.mxu0 %v1123
    %1127 = vmatprep.subr.bf16.mxu0 0
    %1128 = vmatpush1.bf16.msra.mxu0 0
    %1129 = vmatprep.subr.bf16.mxu0 0
    %1130 = vmatpush1.bf16.msra.mxu0 0
    %1131 = vmatprep.subr.bf16.mxu0 0
    %1132 = vmatpush1.bf16.msra.mxu0 0
    %1133 = vmatprep.subr.bf16.mxu0 0
    %1134 = vmatpush1.bf16.msra.mxu0 0
    %1135 = vmatprep.subr.bf16.mxu0 0
    %1136 = vmatpush1.bf16.msra.mxu0 0
    %1137 = vmatprep.subr.bf16.mxu0 0
    %1138 = vmatpush1.bf16.msra.mxu0 0
    %1139 = vmatprep.subr.bf16.mxu0 0
    %1140 = vmatpush1.bf16.msra.mxu0 0
    %1141 = vmatprep.subr.bf16.mxu0 0
    %1142 = vmatpush1.bf16.msra.mxu0 0
    %1143 = vmatprep.subr.bf16.mxu0 0
    %1144 = vmatpush1.bf16.msra.mxu0 0
    %1145 = vmatprep.subr.bf16.mxu0 0
    %1146 = vmatpush1.bf16.msra.mxu0 0
    %1147 = vmatprep.subr.bf16.mxu0 0
    %1148 = vmatpush1.bf16.msra.mxu0 0
    %1149 = vmatprep.subr.bf16.mxu0 0
    %1150 = vmatpush1.bf16.msra.mxu0 0
    %1151 = vmatprep.subr.bf16.mxu0 0
    %1152 = vmatpush1.bf16.msra.mxu0 0
    %1153 = vmatprep.subr.bf16.mxu0 0
    %1154 = vmatpush1.bf16.msra.mxu0 0
    %1155 = vmatprep.subr.bf16.mxu0 0
    %1156 = vmatpush1.bf16.msra.mxu0 0
    %1157 = vmatprep.mubr.bf16.mxu0 0
    %1158 = vmatmul.mubr.bf16.gmra.mrb[0].mxu0 %v1117
    %v1159 = vpop.f32.mrb[0].mxu0
    %v1160 = vadd.f32 0.0, %v1159
    %v1161 = vpop.f32.mrb[0].mxu0
    %v1162 = vpop.f32.mrb[0].mxu0
    %v1163 = vadd.f32 0.0, %v1162
    %v1164 = vpop.f32.mrb[0].mxu0
    %1165 = vmatprep.mubr.bf16.mxu0 0
    %1166 = vmatmul.mubr.bf16.gmra.mrb[0].mxu0 %v1120
    %v1167 = vpop.f32.mrb[0].mxu0
    %v1168 = vadd.f32 0.0, %v1167
    %v1169 = vpop.f32.mrb[0].mxu0
    %v1170 = vpop.f32.mrb[0].mxu0
    %v1171 = vadd.f32 0.0, %v1170
    %v1172 = vpop.f32.mrb[0].mxu0
    %1173 = vdwg.mxu0
    %v1175 = vsel %vm238, %v670, 0
    %v1178 = vsel %vm238, %v671, 0
    %v1181 = vsel %vm482, %v672, 0
    %1183 = vmatprep.subr.bf16.mxu0 0
    %1184 = vmatpush1.bf16.msra.mxu0 %v1181
    %1185 = vmatprep.subr.bf16.mxu0 0
    %1186 = vmatpush1.bf16.msra.mxu0 0
    %1187 = vmatprep.subr.bf16.mxu0 0
    %1188 = vmatpush1.bf16.msra.mxu0 0
    %1189 = vmatprep.subr.bf16.mxu0 0
    %1190 = vmatpush1.bf16.msra.mxu0 0
    %1191 = vmatprep.subr.bf16.mxu0 0
    %1192 = vmatpush1.bf16.msra.mxu0 0
    %1193 = vmatprep.subr.bf16.mxu0 0
    %1194 = vmatpush1.bf16.msra.mxu0 0
    %1195 = vmatprep.subr.bf16.mxu0 0
    %1196 = vmatpush1.bf16.msra.mxu0 0
    %1197 = vmatprep.subr.bf16.mxu0 0
    %1198 = vmatpush1.bf16.msra.mxu0 0
    %1199 = vmatprep.subr.bf16.mxu0 0
    %1200 = vmatpush1.bf16.msra.mxu0 0
    %1201 = vmatprep.subr.bf16.mxu0 0
    %1202 = vmatpush1.bf16.msra.mxu0 0
    %1203 = vmatprep.subr.bf16.mxu0 0
    %1204 = vmatpush1.bf16.msra.mxu0 0
    %1205 = vmatprep.subr.bf16.mxu0 0
    %1206 = vmatpush1.bf16.msra.mxu0 0
    %1207 = vmatprep.subr.bf16.mxu0 0
    %1208 = vmatpush1.bf16.msra.mxu0 0
    %1209 = vmatprep.subr.bf16.mxu0 0
    %1210 = vmatpush1.bf16.msra.mxu0 0
    %1211 = vmatprep.subr.bf16.mxu0 0
    %1212 = vmatpush1.bf16.msra.mxu0 0
    %1213 = vmatprep.subr.bf16.mxu0 0
    %1214 = vmatpush1.bf16.msra.mxu0 0
    %1215 = vmatprep.mubr.bf16.mxu0 0
    %1216 = vmatmul.mubr.bf16.gmra.mrb[0].mxu0 %v1175
    %v1217 = vpop.f32.mrb[0].mxu0
    %v1218 = vadd.f32 %v1160, %v1217
    %v1219 = vpop.f32.mrb[0].mxu0
    %v1220 = vpop.f32.mrb[0].mxu0
    %v1221 = vadd.f32 %v1163, %v1220
    %v1222 = vpop.f32.mrb[0].mxu0
    %1223 = vmatprep.mubr.bf16.mxu0 0
    %1224 = vmatmul.mubr.bf16.gmra.mrb[0].mxu0 %v1178
    %v1225 = vpop.f32.mrb[0].mxu0
    %v1226 = vadd.f32 %v1168, %v1225
    %v1227 = vpop.f32.mrb[0].mxu0
    %v1228 = vpop.f32.mrb[0].mxu0
    %v1229 = vadd.f32 %v1171, %v1228
    %v1230 = vpop.f32.mrb[0].mxu0
    %1231 = vdwg.mxu0
    %1232 = vrot.lane.b32.xlu0 %v232, 112
    %v1233 = vpop.permute.xlu0 %1232
    %1234 = vrot.lane.b32.xlu0 %v232, 80
    %v1235 = vpop.permute.xlu0 %1234
    %v1237 = vsel %vm238, %v1233, 0
    %v1240 = vsel %vm238, %v1235, 0
    %1242 = vmatprep.subr.bf16.mxu0 0
    %1243 = vmatpush1.bf16.xpose.msra.mxu0 %v1240
    %1244 = vmatprep.subr.bf16.mxu0 0
    %1245 = vmatpush1.bf16.xpose.msra.mxu0 0
    %1246 = vmatprep.subr.bf16.mxu0 0
    %1247 = vmatpush1.bf16.xpose.msra.mxu0 0
    %1248 = vmatprep.subr.bf16.mxu0 0
    %1249 = vmatpush1.bf16.xpose.msra.mxu0 0
    %1250 = vmatprep.subr.bf16.mxu0 0
    %1251 = vmatpush1.bf16.xpose.msra.mxu0 0
    %1252 = vmatprep.subr.bf16.mxu0 0
    %1253 = vmatpush1.bf16.xpose.msra.mxu0 0
    %1254 = vmatprep.subr.bf16.mxu0 0
    %1255 = vmatpush1.bf16.xpose.msra.mxu0 0
    %1256 = vmatprep.subr.bf16.mxu0 0
    %1257 = vmatpush1.bf16.xpose.msra.mxu0 0
    %1258 = vmatprep.subr.bf16.mxu0 0
    %1259 = vmatpush1.bf16.xpose.msra.mxu0 0
    %1260 = vmatprep.subr.bf16.mxu0 0
    %1261 = vmatpush1.bf16.xpose.msra.mxu0 0
    %1262 = vmatprep.subr.bf16.mxu0 0
    %1263 = vmatpush1.bf16.xpose.msra.mxu0 0
    %1264 = vmatprep.subr.bf16.mxu0 0
    %1265 = vmatpush1.bf16.xpose.msra.mxu0 0
    %1266 = vmatprep.subr.bf16.mxu0 0
    %1267 = vmatpush1.bf16.xpose.msra.mxu0 0
    %1268 = vmatprep.subr.bf16.mxu0 0
    %1269 = vmatpush1.bf16.xpose.msra.mxu0 0
    %1270 = vmatprep.subr.bf16.mxu0 0
    %1271 = vmatpush1.bf16.xpose.msra.mxu0 0
    %1272 = vmatprep.subr.bf16.mxu0 0
    %1273 = vmatpush1.bf16.xpose.msra.mxu0 0
    %1274 = vmatprep.mubr.bf16.mxu0 0
    %1275 = vmatmul.mubr.bf16.gmra.mrb[0].mxu0 %v1237
    %v1276 = vpop.f32.mrb[0].mxu0
    %v1277 = vadd.f32 0.0, %v1276
    %v1278 = vpop.f32.mrb[0].mxu0
    %v1279 = vpop.f32.mrb[0].mxu0
    %v1280 = vpop.f32.mrb[0].mxu0
    %1281 = vdwg.mxu0
    %1282 = vrot.lane.b32.xlu0 %v233, 112
    %v1283 = vpop.permute.xlu0 %1282
    %1284 = vrot.lane.b32.xlu0 %v233, 80
    %v1285 = vpop.permute.xlu0 %1284
    %v1287 = vsel %vm238, %v1283, 0
    %v1290 = vsel %vm238, %v1285, 0
    %1292 = vmatprep.subr.bf16.mxu0 0
    %1293 = vmatpush1.bf16.xpose.msra.mxu0 %v1290
    %1294 = vmatprep.subr.bf16.mxu0 0
    %1295 = vmatpush1.bf16.xpose.msra.mxu0 0
    %1296 = vmatprep.subr.bf16.mxu0 0
    %1297 = vmatpush1.bf16.xpose.msra.mxu0 0
    %1298 = vmatprep.subr.bf16.mxu0 0
    %1299 = vmatpush1.bf16.xpose.msra.mxu0 0
    %1300 = vmatprep.subr.bf16.mxu0 0
    %1301 = vmatpush1.bf16.xpose.msra.mxu0 0
    %1302 = vmatprep.subr.bf16.mxu0 0
    %1303 = vmatpush1.bf16.xpose.msra.mxu0 0
    %1304 = vmatprep.subr.bf16.mxu0 0
    %1305 = vmatpush1.bf16.xpose.msra.mxu0 0
    %1306 = vmatprep.subr.bf16.mxu0 0
    %1307 = vmatpush1.bf16.xpose.msra.mxu0 0
    %1308 = vmatprep.subr.bf16.mxu0 0
    %1309 = vmatpush1.bf16.xpose.msra.mxu0 0
    %1310 = vmatprep.subr.bf16.mxu0 0
    %1311 = vmatpush1.bf16.xpose.msra.mxu0 0
    %1312 = vmatprep.subr.bf16.mxu0 0
    %1313 = vmatpush1.bf16.xpose.msra.mxu0 0
    %1314 = vmatprep.subr.bf16.mxu0 0
    %1315 = vmatpush1.bf16.xpose.msra.mxu0 0
    %1316 = vmatprep.subr.bf16.mxu0 0
    %1317 = vmatpush1.bf16.xpose.msra.mxu0 0
    %1318 = vmatprep.subr.bf16.mxu0 0
    %1319 = vmatpush1.bf16.xpose.msra.mxu0 0
    %1320 = vmatprep.subr.bf16.mxu0 0
    %1321 = vmatpush1.bf16.xpose.msra.mxu0 0
    %1322 = vmatprep.subr.bf16.mxu0 0
    %1323 = vmatpush1.bf16.xpose.msra.mxu0 0
    %1324 = vmatprep.mubr.bf16.mxu0 0
    %1325 = vmatmul.mubr.bf16.gmra.mrb[0].mxu0 %v1287
    %v1326 = vpop.f32.mrb[0].mxu0
    %v1327 = vadd.f32 0.0, %v1326
    %v1328 = vpop.f32.mrb[0].mxu0
    %v1329 = vpop.f32.mrb[0].mxu0
    %v1330 = vpop.f32.mrb[0].mxu0
    %1331 = vdwg.mxu0
    %1332 = vrot.lane.b32.xlu0 %v234, 112
    %v1333 = vpop.permute.xlu0 %1332
    %1334 = vrot.lane.b32.xlu0 %v234, 80
    %v1335 = vpop.permute.xlu0 %1334
    %v1337 = vsel %vm238, %v1333, 0
    %v1340 = vsel %vm238, %v1335, 0
    %1342 = vmatprep.subr.bf16.mxu0 0
    %1343 = vmatpush1.bf16.xpose.msra.mxu0 %v1340
    %1344 = vmatprep.subr.bf16.mxu0 0
    %1345 = vmatpush1.bf16.xpose.msra.mxu0 0
    %1346 = vmatprep.subr.bf16.mxu0 0
    %1347 = vmatpush1.bf16.xpose.msra.mxu0 0
    %1348 = vmatprep.subr.bf16.mxu0 0
    %1349 = vmatpush1.bf16.xpose.msra.mxu0 0
    %1350 = vmatprep.subr.bf16.mxu0 0
    %1351 = vmatpush1.bf16.xpose.msra.mxu0 0
    %1352 = vmatprep.subr.bf16.mxu0 0
    %1353 = vmatpush1.bf16.xpose.msra.mxu0 0
    %1354 = vmatprep.subr.bf16.mxu0 0
    %1355 = vmatpush1.bf16.xpose.msra.mxu0 0
    %1356 = vmatprep.subr.bf16.mxu0 0
    %1357 = vmatpush1.bf16.xpose.msra.mxu0 0
    %1358 = vmatprep.subr.bf16.mxu0 0
    %1359 = vmatpush1.bf16.xpose.msra.mxu0 0
    %1360 = vmatprep.subr.bf16.mxu0 0
    %1361 = vmatpush1.bf16.xpose.msra.mxu0 0
    %1362 = vmatprep.subr.bf16.mxu0 0
    %1363 = vmatpush1.bf16.xpose.msra.mxu0 0
    %1364 = vmatprep.subr.bf16.mxu0 0
    %1365 = vmatpush1.bf16.xpose.msra.mxu0 0
    %1366 = vmatprep.subr.bf16.mxu0 0
    %1367 = vmatpush1.bf16.xpose.msra.mxu0 0
    %1368 = vmatprep.subr.bf16.mxu0 0
    %1369 = vmatpush1.bf16.xpose.msra.mxu0 0
    %1370 = vmatprep.subr.bf16.mxu0 0
    %1371 = vmatpush1.bf16.xpose.msra.mxu0 0
    %1372 = vmatprep.subr.bf16.mxu0 0
    %1373 = vmatpush1.bf16.xpose.msra.mxu0 0
    %1374 = vmatprep.mubr.bf16.mxu0 0
    %1375 = vmatmul.mubr.bf16.gmra.mrb[0].mxu0 %v1337
    %v1376 = vpop.f32.mrb[0].mxu0
    %v1377 = vadd.f32 0.0, %v1376
    %v1378 = vpop.f32.mrb[0].mxu0
    %v1379 = vpop.f32.mrb[0].mxu0
    %v1380 = vpop.f32.mrb[0].mxu0
    %1381 = vdwg.mxu0
    %1382 = vrot.lane.b32.xlu0 %v235, 112
    %v1383 = vpop.permute.xlu0 %1382
    %1384 = vrot.lane.b32.xlu0 %v235, 80
    %v1385 = vpop.permute.xlu0 %1384
    %v1387 = vsel %vm238, %v1383, 0
    %v1390 = vsel %vm238, %v1385, 0
    %1392 = vmatprep.subr.bf16.mxu0 0
    %1393 = vmatpush1.bf16.xpose.msra.mxu0 %v1390
    %1394 = vmatprep.subr.bf16.mxu0 0
    %1395 = vmatpush1.bf16.xpose.msra.mxu0 0
    %1396 = vmatprep.subr.bf16.mxu0 0
    %1397 = vmatpush1.bf16.xpose.msra.mxu0 0
    %1398 = vmatprep.subr.bf16.mxu0 0
    %1399 = vmatpush1.bf16.xpose.msra.mxu0 0
    %1400 = vmatprep.subr.bf16.mxu0 0
    %1401 = vmatpush1.bf16.xpose.msra.mxu0 0
    %1402 = vmatprep.subr.bf16.mxu0 0
    %1403 = vmatpush1.bf16.xpose.msra.mxu0 0
    %1404 = vmatprep.subr.bf16.mxu0 0
    %1405 = vmatpush1.bf16.xpose.msra.mxu0 0
    %1406 = vmatprep.subr.bf16.mxu0 0
    %1407 = vmatpush1.bf16.xpose.msra.mxu0 0
    %1408 = vmatprep.subr.bf16.mxu0 0
    %1409 = vmatpush1.bf16.xpose.msra.mxu0 0
    %1410 = vmatprep.subr.bf16.mxu0 0
    %1411 = vmatpush1.bf16.xpose.msra.mxu0 0
    %1412 = vmatprep.subr.bf16.mxu0 0
    %1413 = vmatpush1.bf16.xpose.msra.mxu0 0
    %1414 = vmatprep.subr.bf16.mxu0 0
    %1415 = vmatpush1.bf16.xpose.msra.mxu0 0
    %1416 = vmatprep.subr.bf16.mxu0 0
    %1417 = vmatpush1.bf16.xpose.msra.mxu0 0
    %1418 = vmatprep.subr.bf16.mxu0 0
    %1419 = vmatpush1.bf16.xpose.msra.mxu0 0
    %1420 = vmatprep.subr.bf16.mxu0 0
    %1421 = vmatpush1.bf16.xpose.msra.mxu0 0
    %1422 = vmatprep.subr.bf16.mxu0 0
    %1423 = vmatpush1.bf16.xpose.msra.mxu0 0
    %1424 = vmatprep.mubr.bf16.mxu0 0
    %1425 = vmatmul.mubr.bf16.gmra.mrb[0].mxu0 %v1387
    %v1426 = vpop.f32.mrb[0].mxu0
    %v1427 = vadd.f32 0.0, %v1426
    %v1428 = vpop.f32.mrb[0].mxu0
    %v1429 = vpop.f32.mrb[0].mxu0
    %v1430 = vpop.f32.mrb[0].mxu0
    %1431 = vdwg.mxu0
    %v1432 = vsel %vm238, %v1277, -inf
    %1433 = vmax.xlane.f32.xlu0 %v1432
    %v1434 = vpop.xlane.xlu0 %1433
    %v1435 = vsel %vm238, %v1327, -inf
    %1436 = vmax.xlane.f32.xlu0 %v1435
    %v1437 = vpop.xlane.xlu0 %1436
    %v1438 = vsel %vm238, %v1377, -inf
    %1439 = vmax.xlane.f32.xlu0 %v1438
    %v1440 = vpop.xlane.xlu0 %1439
    %v1441 = vsel %vm238, %v1427, -inf
    %1442 = vmax.xlane.f32.xlu0 %v1441
    %v1443 = vpop.xlane.xlu0 %1442
    %v1444 = vsub.f32 %v1277, %v1434
    %v1445 = vsub.f32 %v1327, %v1437
    %v1446 = vsub.f32 %v1377, %v1440
    %v1447 = vsub.f32 %v1427, %v1443
    %v1448 = vmul.f32 %v1444, 1.442695
    %v1449 = vpow.pop %v1448
    %v1450 = vmul.f32 %v1445, 1.442695
    %v1451 = vpow.pop %v1450
    %v1452 = vmul.f32 %v1446, 1.442695
    %v1453 = vpow.pop %v1452
    %v1454 = vmul.f32 %v1447, 1.442695
    %v1455 = vpow.pop %v1454
    %v1456 = vsel %vm238, %v1449, 0.0
    %1457 = vadd.xlane.f32.xlu0 %v1456
    %v1458 = vpop.xlane.xlu0 %1457
    %v1459 = vsel %vm238, %v1451, 0.0
    %1460 = vadd.xlane.f32.xlu0 %v1459
    %v1461 = vpop.xlane.xlu0 %1460
    %v1462 = vsel %vm238, %v1453, 0.0
    %1463 = vadd.xlane.f32.xlu0 %v1462
    %v1464 = vpop.xlane.xlu0 %1463
    %v1465 = vsel %vm238, %v1455, 0.0
    %1466 = vadd.xlane.f32.xlu0 %v1465
    %v1467 = vpop.xlane.xlu0 %1466
    %v1468 = vrcp.pop %v1458
    %v1469 = vrcp.pop %v1461
    %v1470 = vrcp.pop %v1464
    %v1471 = vrcp.pop %v1467
    %v1472 = vmul.f32 %v1449, %v1468
    %v1473 = vmul.f32 %v1451, %v1469
    %v1474 = vmul.f32 %v1453, %v1470
    %v1475 = vmul.f32 %v1455, %v1471
    %v1476 = vpack.c.bf16 %v1472, %v1472
    %v1477 = vpack.c.bf16 %v1473, %v1473
    %v1478 = vpack.c.bf16 %v1474, %v1474
    %v1479 = vpack.c.bf16 %v1475, %v1475
    %1480 = vrot.lane.b32.xlu0 %v232, 48
    %v1481 = vpop.permute.xlu0 %1480
    %v1483 = vsel %vm238, %v1476, 0
    %v1486 = vsel %vm482, %v1481, 0
    %1488 = vmatprep.subr.bf16.mxu0 0
    %1489 = vmatpush1.bf16.msra.mxu0 %v1486
    %1490 = vmatprep.subr.bf16.mxu0 0
    %1491 = vmatpush1.bf16.msra.mxu0 0
    %1492 = vmatprep.subr.bf16.mxu0 0
    %1493 = vmatpush1.bf16.msra.mxu0 0
    %1494 = vmatprep.subr.bf16.mxu0 0
    %1495 = vmatpush1.bf16.msra.mxu0 0
    %1496 = vmatprep.subr.bf16.mxu0 0
    %1497 = vmatpush1.bf16.msra.mxu0 0
    %1498 = vmatprep.subr.bf16.mxu0 0
    %1499 = vmatpush1.bf16.msra.mxu0 0
    %1500 = vmatprep.subr.bf16.mxu0 0
    %1501 = vmatpush1.bf16.msra.mxu0 0
    %1502 = vmatprep.subr.bf16.mxu0 0
    %1503 = vmatpush1.bf16.msra.mxu0 0
    %1504 = vmatprep.subr.bf16.mxu0 0
    %1505 = vmatpush1.bf16.msra.mxu0 0
    %1506 = vmatprep.subr.bf16.mxu0 0
    %1507 = vmatpush1.bf16.msra.mxu0 0
    %1508 = vmatprep.subr.bf16.mxu0 0
    %1509 = vmatpush1.bf16.msra.mxu0 0
    %1510 = vmatprep.subr.bf16.mxu0 0
    %1511 = vmatpush1.bf16.msra.mxu0 0
    %1512 = vmatprep.subr.bf16.mxu0 0
    %1513 = vmatpush1.bf16.msra.mxu0 0
    %1514 = vmatprep.subr.bf16.mxu0 0
    %1515 = vmatpush1.bf16.msra.mxu0 0
    %1516 = vmatprep.subr.bf16.mxu0 0
    %1517 = vmatpush1.bf16.msra.mxu0 0
    %1518 = vmatprep.subr.bf16.mxu0 0
    %1519 = vmatpush1.bf16.msra.mxu0 0
    %1520 = vmatprep.mubr.bf16.mxu0 0
    %1521 = vmatmul.mubr.bf16.gmra.mrb[0].mxu0 %v1483
    %v1522 = vpop.f32.mrb[0].mxu0
    %v1523 = vadd.f32 0.0, %v1522
    %v1524 = vpop.f32.mrb[0].mxu0
    %v1525 = vpop.f32.mrb[0].mxu0
    %v1526 = vpop.f32.mrb[0].mxu0
    %1527 = vdwg.mxu0
    %1528 = vrot.lane.b32.xlu0 %v233, 48
    %v1529 = vpop.permute.xlu0 %1528
    %v1531 = vsel %vm238, %v1477, 0
    %v1534 = vsel %vm482, %v1529, 0
    %1536 = vmatprep.subr.bf16.mxu0 0
    %1537 = vmatpush1.bf16.msra.mxu0 %v1534
    %1538 = vmatprep.subr.bf16.mxu0 0
    %1539 = vmatpush1.bf16.msra.mxu0 0
    %1540 = vmatprep.subr.bf16.mxu0 0
    %1541 = vmatpush1.bf16.msra.mxu0 0
    %1542 = vmatprep.subr.bf16.mxu0 0
    %1543 = vmatpush1.bf16.msra.mxu0 0
    %1544 = vmatprep.subr.bf16.mxu0 0
    %1545 = vmatpush1.bf16.msra.mxu0 0
    %1546 = vmatprep.subr.bf16.mxu0 0
    %1547 = vmatpush1.bf16.msra.mxu0 0
    %1548 = vmatprep.subr.bf16.mxu0 0
    %1549 = vmatpush1.bf16.msra.mxu0 0
    %1550 = vmatprep.subr.bf16.mxu0 0
    %1551 = vmatpush1.bf16.msra.mxu0 0
    %1552 = vmatprep.subr.bf16.mxu0 0
    %1553 = vmatpush1.bf16.msra.mxu0 0
    %1554 = vmatprep.subr.bf16.mxu0 0
    %1555 = vmatpush1.bf16.msra.mxu0 0
    %1556 = vmatprep.subr.bf16.mxu0 0
    %1557 = vmatpush1.bf16.msra.mxu0 0
    %1558 = vmatprep.subr.bf16.mxu0 0
    %1559 = vmatpush1.bf16.msra.mxu0 0
    %1560 = vmatprep.subr.bf16.mxu0 0
    %1561 = vmatpush1.bf16.msra.mxu0 0
    %1562 = vmatprep.subr.bf16.mxu0 0
    %1563 = vmatpush1.bf16.msra.mxu0 0
    %1564 = vmatprep.subr.bf16.mxu0 0
    %1565 = vmatpush1.bf16.msra.mxu0 0
    %1566 = vmatprep.subr.bf16.mxu0 0
    %1567 = vmatpush1.bf16.msra.mxu0 0
    %1568 = vmatprep.mubr.bf16.mxu0 0
    %1569 = vmatmul.mubr.bf16.gmra.mrb[0].mxu0 %v1531
    %v1570 = vpop.f32.mrb[0].mxu0
    %v1571 = vadd.f32 0.0, %v1570
    %v1572 = vpop.f32.mrb[0].mxu0
    %v1573 = vpop.f32.mrb[0].mxu0
    %v1574 = vpop.f32.mrb[0].mxu0
    %1575 = vdwg.mxu0
    %1576 = vrot.lane.b32.xlu0 %v234, 48
    %v1577 = vpop.permute.xlu0 %1576
    %v1579 = vsel %vm238, %v1478, 0
    %v1582 = vsel %vm482, %v1577, 0
    %1584 = vmatprep.subr.bf16.mxu0 0
    %1585 = vmatpush1.bf16.msra.mxu0 %v1582
    %1586 = vmatprep.subr.bf16.mxu0 0
    %1587 = vmatpush1.bf16.msra.mxu0 0
    %1588 = vmatprep.subr.bf16.mxu0 0
    %1589 = vmatpush1.bf16.msra.mxu0 0
    %1590 = vmatprep.subr.bf16.mxu0 0
    %1591 = vmatpush1.bf16.msra.mxu0 0
    %1592 = vmatprep.subr.bf16.mxu0 0
    %1593 = vmatpush1.bf16.msra.mxu0 0
    %1594 = vmatprep.subr.bf16.mxu0 0
    %1595 = vmatpush1.bf16.msra.mxu0 0
    %1596 = vmatprep.subr.bf16.mxu0 0
    %1597 = vmatpush1.bf16.msra.mxu0 0
    %1598 = vmatprep.subr.bf16.mxu0 0
    %1599 = vmatpush1.bf16.msra.mxu0 0
    %1600 = vmatprep.subr.bf16.mxu0 0
    %1601 = vmatpush1.bf16.msra.mxu0 0
    %1602 = vmatprep.subr.bf16.mxu0 0
    %1603 = vmatpush1.bf16.msra.mxu0 0
    %1604 = vmatprep.subr.bf16.mxu0 0
    %1605 = vmatpush1.bf16.msra.mxu0 0
    %1606 = vmatprep.subr.bf16.mxu0 0
    %1607 = vmatpush1.bf16.msra.mxu0 0
    %1608 = vmatprep.subr.bf16.mxu0 0
    %1609 = vmatpush1.bf16.msra.mxu0 0
    %1610 = vmatprep.subr.bf16.mxu0 0
    %1611 = vmatpush1.bf16.msra.mxu0 0
    %1612 = vmatprep.subr.bf16.mxu0 0
    %1613 = vmatpush1.bf16.msra.mxu0 0
    %1614 = vmatprep.subr.bf16.mxu0 0
    %1615 = vmatpush1.bf16.msra.mxu0 0
    %1616 = vmatprep.mubr.bf16.mxu0 0
    %1617 = vmatmul.mubr.bf16.gmra.mrb[0].mxu0 %v1579
    %v1618 = vpop.f32.mrb[0].mxu0
    %v1619 = vadd.f32 0.0, %v1618
    %v1620 = vpop.f32.mrb[0].mxu0
    %v1621 = vpop.f32.mrb[0].mxu0
    %v1622 = vpop.f32.mrb[0].mxu0
    %1623 = vdwg.mxu0
    %1624 = vrot.lane.b32.xlu0 %v235, 48
    %v1625 = vpop.permute.xlu0 %1624
    %v1627 = vsel %vm238, %v1479, 0
    %v1630 = vsel %vm482, %v1625, 0
    %1632 = vmatprep.subr.bf16.mxu0 0
    %1633 = vmatpush1.bf16.msra.mxu0 %v1630
    %1634 = vmatprep.subr.bf16.mxu0 0
    %1635 = vmatpush1.bf16.msra.mxu0 0
    %1636 = vmatprep.subr.bf16.mxu0 0
    %1637 = vmatpush1.bf16.msra.mxu0 0
    %1638 = vmatprep.subr.bf16.mxu0 0
    %1639 = vmatpush1.bf16.msra.mxu0 0
    %1640 = vmatprep.subr.bf16.mxu0 0
    %1641 = vmatpush1.bf16.msra.mxu0 0
    %1642 = vmatprep.subr.bf16.mxu0 0
    %1643 = vmatpush1.bf16.msra.mxu0 0
    %1644 = vmatprep.subr.bf16.mxu0 0
    %1645 = vmatpush1.bf16.msra.mxu0 0
    %1646 = vmatprep.subr.bf16.mxu0 0
    %1647 = vmatpush1.bf16.msra.mxu0 0
    %1648 = vmatprep.subr.bf16.mxu0 0
    %1649 = vmatpush1.bf16.msra.mxu0 0
    %1650 = vmatprep.subr.bf16.mxu0 0
    %1651 = vmatpush1.bf16.msra.mxu0 0
    %1652 = vmatprep.subr.bf16.mxu0 0
    %1653 = vmatpush1.bf16.msra.mxu0 0
    %1654 = vmatprep.subr.bf16.mxu0 0
    %1655 = vmatpush1.bf16.msra.mxu0 0
    %1656 = vmatprep.subr.bf16.mxu0 0
    %1657 = vmatpush1.bf16.msra.mxu0 0
    %1658 = vmatprep.subr.bf16.mxu0 0
    %1659 = vmatpush1.bf16.msra.mxu0 0
    %1660 = vmatprep.subr.bf16.mxu0 0
    %1661 = vmatpush1.bf16.msra.mxu0 0
    %1662 = vmatprep.subr.bf16.mxu0 0
    %1663 = vmatpush1.bf16.msra.mxu0 0
    %1664 = vmatprep.mubr.bf16.mxu0 0
    %1665 = vmatmul.mubr.bf16.gmra.mrb[0].mxu0 %v1627
    %v1666 = vpop.f32.mrb[0].mxu0
    %v1667 = vadd.f32 0.0, %v1666
    %v1668 = vpop.f32.mrb[0].mxu0
    %v1669 = vpop.f32.mrb[0].mxu0
    %v1670 = vpop.f32.mrb[0].mxu0
    %1671 = vdwg.mxu0
    %v1672 = vpack.c.bf16 %v1571, %v1523
    %v1673 = vpack.c.bf16 %v1667, %v1619
    %v1674 = vld [vmem:[#allocation2 + $0x8] sm:$0xf]
    %v1676 = vsel %vm238, %v1672, 0
    %v1679 = vsel %vm238, %v1673, 0
    %v1682 = vsel %vm482, %v1674, 0
    %1684 = vmatprep.subr.bf16.mxu0 0
    %1685 = vmatpush1.bf16.msra.mxu0 %v1682
    %1686 = vmatprep.subr.bf16.mxu0 0
    %1687 = vmatpush1.bf16.msra.mxu0 0
    %1688 = vmatprep.subr.bf16.mxu0 0
    %1689 = vmatpush1.bf16.msra.mxu0 0
    %1690 = vmatprep.subr.bf16.mxu0 0
    %1691 = vmatpush1.bf16.msra.mxu0 0
    %1692 = vmatprep.subr.bf16.mxu0 0
    %1693 = vmatpush1.bf16.msra.mxu0 0
    %1694 = vmatprep.subr.bf16.mxu0 0
    %1695 = vmatpush1.bf16.msra.mxu0 0
    %1696 = vmatprep.subr.bf16.mxu0 0
    %1697 = vmatpush1.bf16.msra.mxu0 0
    %1698 = vmatprep.subr.bf16.mxu0 0
    %1699 = vmatpush1.bf16.msra.mxu0 0
    %1700 = vmatprep.subr.bf16.mxu0 0
    %1701 = vmatpush1.bf16.msra.mxu0 0
    %1702 = vmatprep.subr.bf16.mxu0 0
    %1703 = vmatpush1.bf16.msra.mxu0 0
    %1704 = vmatprep.subr.bf16.mxu0 0
    %1705 = vmatpush1.bf16.msra.mxu0 0
    %1706 = vmatprep.subr.bf16.mxu0 0
    %1707 = vmatpush1.bf16.msra.mxu0 0
    %1708 = vmatprep.subr.bf16.mxu0 0
    %1709 = vmatpush1.bf16.msra.mxu0 0
    %1710 = vmatprep.subr.bf16.mxu0 0
    %1711 = vmatpush1.bf16.msra.mxu0 0
    %1712 = vmatprep.subr.bf16.mxu0 0
    %1713 = vmatpush1.bf16.msra.mxu0 0
    %1714 = vmatprep.subr.bf16.mxu0 0
    %1715 = vmatpush1.bf16.msra.mxu0 0
    %1716 = vmatprep.mubr.bf16.mxu0 0
    %1717 = vmatmul.mubr.bf16.gmra.mrb[0].mxu0 %v1676
    %v1718 = vpop.f32.mrb[0].mxu0
    %v1719 = vadd.f32 0.0, %v1718
    %v1720 = vpop.f32.mrb[0].mxu0
    %v1721 = vpop.f32.mrb[0].mxu0
    %v1722 = vadd.f32 0.0, %v1721
    %v1723 = vpop.f32.mrb[0].mxu0
    %1724 = vmatprep.mubr.bf16.mxu0 0
    %1725 = vmatmul.mubr.bf16.gmra.mrb[0].mxu0 %v1679
    %v1726 = vpop.f32.mrb[0].mxu0
    %v1727 = vadd.f32 0.0, %v1726
    %v1728 = vpop.f32.mrb[0].mxu0
    %v1729 = vpop.f32.mrb[0].mxu0
    %v1730 = vadd.f32 0.0, %v1729
    %v1731 = vpop.f32.mrb[0].mxu0
    %1732 = vdwg.mxu0
    %v1733 = vadd.f32 %v1218, %v1719
    %v1734 = vadd.f32 %v1221, %v1722
    %v1735 = vadd.f32 %v1226, %v1727
    %v1736 = vadd.f32 %v1229, %v1730
    %1737 = vrot.lane.b32.xlu0 %v232, 104
    %v1738 = vpop.permute.xlu0 %1737
    %1739 = vrot.lane.b32.xlu0 %v232, 72
    %v1740 = vpop.permute.xlu0 %1739
    %v1742 = vsel %vm238, %v1738, 0
    %v1745 = vsel %vm238, %v1740, 0
    %1747 = vmatprep.subr.bf16.mxu0 0
    %1748 = vmatpush1.bf16.xpose.msra.mxu0 %v1745
    %1749 = vmatprep.subr.bf16.mxu0 0
    %1750 = vmatpush1.bf16.xpose.msra.mxu0 0
    %1751 = vmatprep.subr.bf16.mxu0 0
    %1752 = vmatpush1.bf16.xpose.msra.mxu0 0
    %1753 = vmatprep.subr.bf16.mxu0 0
    %1754 = vmatpush1.bf16.xpose.msra.mxu0 0
    %1755 = vmatprep.subr.bf16.mxu0 0
    %1756 = vmatpush1.bf16.xpose.msra.mxu0 0
    %1757 = vmatprep.subr.bf16.mxu0 0
    %1758 = vmatpush1.bf16.xpose.msra.mxu0 0
    %1759 = vmatprep.subr.bf16.mxu0 0
    %1760 = vmatpush1.bf16.xpose.msra.mxu0 0
    %1761 = vmatprep.subr.bf16.mxu0 0
    %1762 = vmatpush1.bf16.xpose.msra.mxu0 0
    %1763 = vmatprep.subr.bf16.mxu0 0
    %1764 = vmatpush1.bf16.xpose.msra.mxu0 0
    %1765 = vmatprep.subr.bf16.mxu0 0
    %1766 = vmatpush1.bf16.xpose.msra.mxu0 0
    %1767 = vmatprep.subr.bf16.mxu0 0
    %1768 = vmatpush1.bf16.xpose.msra.mxu0 0
    %1769 = vmatprep.subr.bf16.mxu0 0
    %1770 = vmatpush1.bf16.xpose.msra.mxu0 0
    %1771 = vmatprep.subr.bf16.mxu0 0
    %1772 = vmatpush1.bf16.xpose.msra.mxu0 0
    %1773 = vmatprep.subr.bf16.mxu0 0
    %1774 = vmatpush1.bf16.xpose.msra.mxu0 0
    %1775 = vmatprep.subr.bf16.mxu0 0
    %1776 = vmatpush1.bf16.xpose.msra.mxu0 0
    %1777 = vmatprep.subr.bf16.mxu0 0
    %1778 = vmatpush1.bf16.xpose.msra.mxu0 0
    %1779 = vmatprep.mubr.bf16.mxu0 0
    %1780 = vmatmul.mubr.bf16.gmra.mrb[0].mxu0 %v1742
    %v1781 = vpop.f32.mrb[0].mxu0
    %v1782 = vadd.f32 0.0, %v1781
    %v1783 = vpop.f32.mrb[0].mxu0
    %v1784 = vpop.f32.mrb[0].mxu0
    %v1785 = vpop.f32.mrb[0].mxu0
    %1786 = vdwg.mxu0
    %1787 = vrot.lane.b32.xlu0 %v233, 104
    %v1788 = vpop.permute.xlu0 %1787
    %1789 = vrot.lane.b32.xlu0 %v233, 72
    %v1790 = vpop.permute.xlu0 %1789
    %v1792 = vsel %vm238, %v1788, 0
    %v1795 = vsel %vm238, %v1790, 0
    %1797 = vmatprep.subr.bf16.mxu0 0
    %1798 = vmatpush1.bf16.xpose.msra.mxu0 %v1795
    %1799 = vmatprep.subr.bf16.mxu0 0
    %1800 = vmatpush1.bf16.xpose.msra.mxu0 0
    %1801 = vmatprep.subr.bf16.mxu0 0
    %1802 = vmatpush1.bf16.xpose.msra.mxu0 0
    %1803 = vmatprep.subr.bf16.mxu0 0
    %1804 = vmatpush1.bf16.xpose.msra.mxu0 0
    %1805 = vmatprep.subr.bf16.mxu0 0
    %1806 = vmatpush1.bf16.xpose.msra.mxu0 0
    %1807 = vmatprep.subr.bf16.mxu0 0
    %1808 = vmatpush1.bf16.xpose.msra.mxu0 0
    %1809 = vmatprep.subr.bf16.mxu0 0
    %1810 = vmatpush1.bf16.xpose.msra.mxu0 0
    %1811 = vmatprep.subr.bf16.mxu0 0
    %1812 = vmatpush1.bf16.xpose.msra.mxu0 0
    %1813 = vmatprep.subr.bf16.mxu0 0
    %1814 = vmatpush1.bf16.xpose.msra.mxu0 0
    %1815 = vmatprep.subr.bf16.mxu0 0
    %1816 = vmatpush1.bf16.xpose.msra.mxu0 0
    %1817 = vmatprep.subr.bf16.mxu0 0
    %1818 = vmatpush1.bf16.xpose.msra.mxu0 0
    %1819 = vmatprep.subr.bf16.mxu0 0
    %1820 = vmatpush1.bf16.xpose.msra.mxu0 0
    %1821 = vmatprep.subr.bf16.mxu0 0
    %1822 = vmatpush1.bf16.xpose.msra.mxu0 0
    %1823 = vmatprep.subr.bf16.mxu0 0
    %1824 = vmatpush1.bf16.xpose.msra.mxu0 0
    %1825 = vmatprep.subr.bf16.mxu0 0
    %1826 = vmatpush1.bf16.xpose.msra.mxu0 0
    %1827 = vmatprep.subr.bf16.mxu0 0
    %1828 = vmatpush1.bf16.xpose.msra.mxu0 0
    %1829 = vmatprep.mubr.bf16.mxu0 0
    %1830 = vmatmul.mubr.bf16.gmra.mrb[0].mxu0 %v1792
    %v1831 = vpop.f32.mrb[0].mxu0
    %v1832 = vadd.f32 0.0, %v1831
    %v1833 = vpop.f32.mrb[0].mxu0
    %v1834 = vpop.f32.mrb[0].mxu0
    %v1835 = vpop.f32.mrb[0].mxu0
    %1836 = vdwg.mxu0
    %1837 = vrot.lane.b32.xlu0 %v234, 104
    %v1838 = vpop.permute.xlu0 %1837
    %1839 = vrot.lane.b32.xlu0 %v234, 72
    %v1840 = vpop.permute.xlu0 %1839
    %v1842 = vsel %vm238, %v1838, 0
    %v1845 = vsel %vm238, %v1840, 0
    %1847 = vmatprep.subr.bf16.mxu0 0
    %1848 = vmatpush1.bf16.xpose.msra.mxu0 %v1845
    %1849 = vmatprep.subr.bf16.mxu0 0
    %1850 = vmatpush1.bf16.xpose.msra.mxu0 0
    %1851 = vmatprep.subr.bf16.mxu0 0
    %1852 = vmatpush1.bf16.xpose.msra.mxu0 0
    %1853 = vmatprep.subr.bf16.mxu0 0
    %1854 = vmatpush1.bf16.xpose.msra.mxu0 0
    %1855 = vmatprep.subr.bf16.mxu0 0
    %1856 = vmatpush1.bf16.xpose.msra.mxu0 0
    %1857 = vmatprep.subr.bf16.mxu0 0
    %1858 = vmatpush1.bf16.xpose.msra.mxu0 0
    %1859 = vmatprep.subr.bf16.mxu0 0
    %1860 = vmatpush1.bf16.xpose.msra.mxu0 0
    %1861 = vmatprep.subr.bf16.mxu0 0
    %1862 = vmatpush1.bf16.xpose.msra.mxu0 0
    %1863 = vmatprep.subr.bf16.mxu0 0
    %1864 = vmatpush1.bf16.xpose.msra.mxu0 0
    %1865 = vmatprep.subr.bf16.mxu0 0
    %1866 = vmatpush1.bf16.xpose.msra.mxu0 0
    %1867 = vmatprep.subr.bf16.mxu0 0
    %1868 = vmatpush1.bf16.xpose.msra.mxu0 0
    %1869 = vmatprep.subr.bf16.mxu0 0
    %1870 = vmatpush1.bf16.xpose.msra.mxu0 0
    %1871 = vmatprep.subr.bf16.mxu0 0
    %1872 = vmatpush1.bf16.xpose.msra.mxu0 0
    %1873 = vmatprep.subr.bf16.mxu0 0
    %1874 = vmatpush1.bf16.xpose.msra.mxu0 0
    %1875 = vmatprep.subr.bf16.mxu0 0
    %1876 = vmatpush1.bf16.xpose.msra.mxu0 0
    %1877 = vmatprep.subr.bf16.mxu0 0
    %1878 = vmatpush1.bf16.xpose.msra.mxu0 0
    %1879 = vmatprep.mubr.bf16.mxu0 0
    %1880 = vmatmul.mubr.bf16.gmra.mrb[0].mxu0 %v1842
    %v1881 = vpop.f32.mrb[0].mxu0
    %v1882 = vadd.f32 0.0, %v1881
    %v1883 = vpop.f32.mrb[0].mxu0
    %v1884 = vpop.f32.mrb[0].mxu0
    %v1885 = vpop.f32.mrb[0].mxu0
    %1886 = vdwg.mxu0
    %1887 = vrot.lane.b32.xlu0 %v235, 104
    %v1888 = vpop.permute.xlu0 %1887
    %1889 = vrot.lane.b32.xlu0 %v235, 72
    %v1890 = vpop.permute.xlu0 %1889
    %v1892 = vsel %vm238, %v1888, 0
    %v1895 = vsel %vm238, %v1890, 0
    %1897 = vmatprep.subr.bf16.mxu0 0
    %1898 = vmatpush1.bf16.xpose.msra.mxu0 %v1895
    %1899 = vmatprep.subr.bf16.mxu0 0
    %1900 = vmatpush1.bf16.xpose.msra.mxu0 0
    %1901 = vmatprep.subr.bf16.mxu0 0
    %1902 = vmatpush1.bf16.xpose.msra.mxu0 0
    %1903 = vmatprep.subr.bf16.mxu0 0
    %1904 = vmatpush1.bf16.xpose.msra.mxu0 0
    %1905 = vmatprep.subr.bf16.mxu0 0
    %1906 = vmatpush1.bf16.xpose.msra.mxu0 0
    %1907 = vmatprep.subr.bf16.mxu0 0
    %1908 = vmatpush1.bf16.xpose.msra.mxu0 0
    %1909 = vmatprep.subr.bf16.mxu0 0
    %1910 = vmatpush1.bf16.xpose.msra.mxu0 0
    %1911 = vmatprep.subr.bf16.mxu0 0
    %1912 = vmatpush1.bf16.xpose.msra.mxu0 0
    %1913 = vmatprep.subr.bf16.mxu0 0
    %1914 = vmatpush1.bf16.xpose.msra.mxu0 0
    %1915 = vmatprep.subr.bf16.mxu0 0
    %1916 = vmatpush1.bf16.xpose.msra.mxu0 0
    %1917 = vmatprep.subr.bf16.mxu0 0
    %1918 = vmatpush1.bf16.xpose.msra.mxu0 0
    %1919 = vmatprep.subr.bf16.mxu0 0
    %1920 = vmatpush1.bf16.xpose.msra.mxu0 0
    %1921 = vmatprep.subr.bf16.mxu0 0
    %1922 = vmatpush1.bf16.xpose.msra.mxu0 0
    %1923 = vmatprep.subr.bf16.mxu0 0
    %1924 = vmatpush1.bf16.xpose.msra.mxu0 0
    %1925 = vmatprep.subr.bf16.mxu0 0
    %1926 = vmatpush1.bf16.xpose.msra.mxu0 0
    %1927 = vmatprep.subr.bf16.mxu0 0
    %1928 = vmatpush1.bf16.xpose.msra.mxu0 0
    %1929 = vmatprep.mubr.bf16.mxu0 0
    %1930 = vmatmul.mubr.bf16.gmra.mrb[0].mxu0 %v1892
    %v1931 = vpop.f32.mrb[0].mxu0
    %v1932 = vadd.f32 0.0, %v1931
    %v1933 = vpop.f32.mrb[0].mxu0
    %v1934 = vpop.f32.mrb[0].mxu0
    %v1935 = vpop.f32.mrb[0].mxu0
    %1936 = vdwg.mxu0
    %v1937 = vsel %vm238, %v1782, -inf
    %1938 = vmax.xlane.f32.xlu0 %v1937
    %v1939 = vpop.xlane.xlu0 %1938
    %v1940 = vsel %vm238, %v1832, -inf
    %1941 = vmax.xlane.f32.xlu0 %v1940
    %v1942 = vpop.xlane.xlu0 %1941
    %v1943 = vsel %vm238, %v1882, -inf
    %1944 = vmax.xlane.f32.xlu0 %v1943
    %v1945 = vpop.xlane.xlu0 %1944
    %v1946 = vsel %vm238, %v1932, -inf
    %1947 = vmax.xlane.f32.xlu0 %v1946
    %v1948 = vpop.xlane.xlu0 %1947
    %v1949 = vsub.f32 %v1782, %v1939
    %v1950 = vsub.f32 %v1832, %v1942
    %v1951 = vsub.f32 %v1882, %v1945
    %v1952 = vsub.f32 %v1932, %v1948
    %v1953 = vmul.f32 %v1949, 1.442695
    %v1954 = vpow.pop %v1953
    %v1955 = vmul.f32 %v1950, 1.442695
    %v1956 = vpow.pop %v1955
    %v1957 = vmul.f32 %v1951, 1.442695
    %v1958 = vpow.pop %v1957
    %v1959 = vmul.f32 %v1952, 1.442695
    %v1960 = vpow.pop %v1959
    %v1961 = vsel %vm238, %v1954, 0.0
    %1962 = vadd.xlane.f32.xlu0 %v1961
    %v1963 = vpop.xlane.xlu0 %1962
    %v1964 = vsel %vm238, %v1956, 0.0
    %1965 = vadd.xlane.f32.xlu0 %v1964
    %v1966 = vpop.xlane.xlu0 %1965
    %v1967 = vsel %vm238, %v1958, 0.0
    %1968 = vadd.xlane.f32.xlu0 %v1967
    %v1969 = vpop.xlane.xlu0 %1968
    %v1970 = vsel %vm238, %v1960, 0.0
    %1971 = vadd.xlane.f32.xlu0 %v1970
    %v1972 = vpop.xlane.xlu0 %1971
    %v1973 = vrcp.pop %v1963
    %v1974 = vrcp.pop %v1966
    %v1975 = vrcp.pop %v1969
    %v1976 = vrcp.pop %v1972
    %v1977 = vmul.f32 %v1954, %v1973
    %v1978 = vmul.f32 %v1956, %v1974
    %v1979 = vmul.f32 %v1958, %v1975
    %v1980 = vmul.f32 %v1960, %v1976
    %v1981 = vpack.c.bf16 %v1977, %v1977
    %v1982 = vpack.c.bf16 %v1978, %v1978
    %v1983 = vpack.c.bf16 %v1979, %v1979
    %v1984 = vpack.c.bf16 %v1980, %v1980
    %1985 = vrot.lane.b32.xlu0 %v232, 40
    %v1986 = vpop.permute.xlu0 %1985
    %v1988 = vsel %vm238, %v1981, 0
    %v1991 = vsel %vm482, %v1986, 0
    %1993 = vmatprep.subr.bf16.mxu0 0
    %1994 = vmatpush1.bf16.msra.mxu0 %v1991
    %1995 = vmatprep.subr.bf16.mxu0 0
    %1996 = vmatpush1.bf16.msra.mxu0 0
    %1997 = vmatprep.subr.bf16.mxu0 0
    %1998 = vmatpush1.bf16.msra.mxu0 0
    %1999 = vmatprep.subr.bf16.mxu0 0
    %2000 = vmatpush1.bf16.msra.mxu0 0
    %2001 = vmatprep.subr.bf16.mxu0 0
    %2002 = vmatpush1.bf16.msra.mxu0 0
    %2003 = vmatprep.subr.bf16.mxu0 0
    %2004 = vmatpush1.bf16.msra.mxu0 0
    %2005 = vmatprep.subr.bf16.mxu0 0
    %2006 = vmatpush1.bf16.msra.mxu0 0
    %2007 = vmatprep.subr.bf16.mxu0 0
    %2008 = vmatpush1.bf16.msra.mxu0 0
    %2009 = vmatprep.subr.bf16.mxu0 0
    %2010 = vmatpush1.bf16.msra.mxu0 0
    %2011 = vmatprep.subr.bf16.mxu0 0
    %2012 = vmatpush1.bf16.msra.mxu0 0
    %2013 = vmatprep.subr.bf16.mxu0 0
    %2014 = vmatpush1.bf16.msra.mxu0 0
    %2015 = vmatprep.subr.bf16.mxu0 0
    %2016 = vmatpush1.bf16.msra.mxu0 0
    %2017 = vmatprep.subr.bf16.mxu0 0
    %2018 = vmatpush1.bf16.msra.mxu0 0
    %2019 = vmatprep.subr.bf16.mxu0 0
    %2020 = vmatpush1.bf16.msra.mxu0 0
    %2021 = vmatprep.subr.bf16.mxu0 0
    %2022 = vmatpush1.bf16.msra.mxu0 0
    %2023 = vmatprep.subr.bf16.mxu0 0
    %2024 = vmatpush1.bf16.msra.mxu0 0
    %2025 = vmatprep.mubr.bf16.mxu0 0
    %2026 = vmatmul.mubr.bf16.gmra.mrb[0].mxu0 %v1988
    %v2027 = vpop.f32.mrb[0].mxu0
    %v2028 = vadd.f32 0.0, %v2027
    %v2029 = vpop.f32.mrb[0].mxu0
    %v2030 = vpop.f32.mrb[0].mxu0
    %v2031 = vpop.f32.mrb[0].mxu0
    %2032 = vdwg.mxu0
    %2033 = vrot.lane.b32.xlu0 %v233, 40
    %v2034 = vpop.permute.xlu0 %2033
    %v2036 = vsel %vm238, %v1982, 0
    %v2039 = vsel %vm482, %v2034, 0
    %2041 = vmatprep.subr.bf16.mxu0 0
    %2042 = vmatpush1.bf16.msra.mxu0 %v2039
    %2043 = vmatprep.subr.bf16.mxu0 0
    %2044 = vmatpush1.bf16.msra.mxu0 0
    %2045 = vmatprep.subr.bf16.mxu0 0
    %2046 = vmatpush1.bf16.msra.mxu0 0
    %2047 = vmatprep.subr.bf16.mxu0 0
    %2048 = vmatpush1.bf16.msra.mxu0 0
    %2049 = vmatprep.subr.bf16.mxu0 0
    %2050 = vmatpush1.bf16.msra.mxu0 0
    %2051 = vmatprep.subr.bf16.mxu0 0
    %2052 = vmatpush1.bf16.msra.mxu0 0
    %2053 = vmatprep.subr.bf16.mxu0 0
    %2054 = vmatpush1.bf16.msra.mxu0 0
    %2055 = vmatprep.subr.bf16.mxu0 0
    %2056 = vmatpush1.bf16.msra.mxu0 0
    %2057 = vmatprep.subr.bf16.mxu0 0
    %2058 = vmatpush1.bf16.msra.mxu0 0
    %2059 = vmatprep.subr.bf16.mxu0 0
    %2060 = vmatpush1.bf16.msra.mxu0 0
    %2061 = vmatprep.subr.bf16.mxu0 0
    %2062 = vmatpush1.bf16.msra.mxu0 0
    %2063 = vmatprep.subr.bf16.mxu0 0
    %2064 = vmatpush1.bf16.msra.mxu0 0
    %2065 = vmatprep.subr.bf16.mxu0 0
    %2066 = vmatpush1.bf16.msra.mxu0 0
    %2067 = vmatprep.subr.bf16.mxu0 0
    %2068 = vmatpush1.bf16.msra.mxu0 0
    %2069 = vmatprep.subr.bf16.mxu0 0
    %2070 = vmatpush1.bf16.msra.mxu0 0
    %2071 = vmatprep.subr.bf16.mxu0 0
    %2072 = vmatpush1.bf16.msra.mxu0 0
    %2073 = vmatprep.mubr.bf16.mxu0 0
    %2074 = vmatmul.mubr.bf16.gmra.mrb[0].mxu0 %v2036
    %v2075 = vpop.f32.mrb[0].mxu0
    %v2076 = vadd.f32 0.0, %v2075
    %v2077 = vpop.f32.mrb[0].mxu0
    %v2078 = vpop.f32.mrb[0].mxu0
    %v2079 = vpop.f32.mrb[0].mxu0
    %2080 = vdwg.mxu0
    %2081 = vrot.lane.b32.xlu0 %v234, 40
    %v2082 = vpop.permute.xlu0 %2081
    %v2084 = vsel %vm238, %v1983, 0
    %v2087 = vsel %vm482, %v2082, 0
    %2089 = vmatprep.subr.bf16.mxu0 0
    %2090 = vmatpush1.bf16.msra.mxu0 %v2087
    %2091 = vmatprep.subr.bf16.mxu0 0
    %2092 = vmatpush1.bf16.msra.mxu0 0
    %2093 = vmatprep.subr.bf16.mxu0 0
    %2094 = vmatpush1.bf16.msra.mxu0 0
    %2095 = vmatprep.subr.bf16.mxu0 0
    %2096 = vmatpush1.bf16.msra.mxu0 0
    %2097 = vmatprep.subr.bf16.mxu0 0
    %2098 = vmatpush1.bf16.msra.mxu0 0
    %2099 = vmatprep.subr.bf16.mxu0 0
    %2100 = vmatpush1.bf16.msra.mxu0 0
    %2101 = vmatprep.subr.bf16.mxu0 0
    %2102 = vmatpush1.bf16.msra.mxu0 0
    %2103 = vmatprep.subr.bf16.mxu0 0
    %2104 = vmatpush1.bf16.msra.mxu0 0
    %2105 = vmatprep.subr.bf16.mxu0 0
    %2106 = vmatpush1.bf16.msra.mxu0 0
    %2107 = vmatprep.subr.bf16.mxu0 0
    %2108 = vmatpush1.bf16.msra.mxu0 0
    %2109 = vmatprep.subr.bf16.mxu0 0
    %2110 = vmatpush1.bf16.msra.mxu0 0
    %2111 = vmatprep.subr.bf16.mxu0 0
    %2112 = vmatpush1.bf16.msra.mxu0 0
    %2113 = vmatprep.subr.bf16.mxu0 0
    %2114 = vmatpush1.bf16.msra.mxu0 0
    %2115 = vmatprep.subr.bf16.mxu0 0
    %2116 = vmatpush1.bf16.msra.mxu0 0
    %2117 = vmatprep.subr.bf16.mxu0 0
    %2118 = vmatpush1.bf16.msra.mxu0 0
    %2119 = vmatprep.subr.bf16.mxu0 0
    %2120 = vmatpush1.bf16.msra.mxu0 0
    %2121 = vmatprep.mubr.bf16.mxu0 0
    %2122 = vmatmul.mubr.bf16.gmra.mrb[0].mxu0 %v2084
    %v2123 = vpop.f32.mrb[0].mxu0
    %v2124 = vadd.f32 0.0, %v2123
    %v2125 = vpop.f32.mrb[0].mxu0
    %v2126 = vpop.f32.mrb[0].mxu0
    %v2127 = vpop.f32.mrb[0].mxu0
    %2128 = vdwg.mxu0
    %2129 = vrot.lane.b32.xlu0 %v235, 40
    %v2130 = vpop.permute.xlu0 %2129
    %v2132 = vsel %vm238, %v1984, 0
    %v2135 = vsel %vm482, %v2130, 0
    %2137 = vmatprep.subr.bf16.mxu0 0
    %2138 = vmatpush1.bf16.msra.mxu0 %v2135
    %2139 = vmatprep.subr.bf16.mxu0 0
    %2140 = vmatpush1.bf16.msra.mxu0 0
    %2141 = vmatprep.subr.bf16.mxu0 0
    %2142 = vmatpush1.bf16.msra.mxu0 0
    %2143 = vmatprep.subr.bf16.mxu0 0
    %2144 = vmatpush1.bf16.msra.mxu0 0
    %2145 = vmatprep.subr.bf16.mxu0 0
    %2146 = vmatpush1.bf16.msra.mxu0 0
    %2147 = vmatprep.subr.bf16.mxu0 0
    %2148 = vmatpush1.bf16.msra.mxu0 0
    %2149 = vmatprep.subr.bf16.mxu0 0
    %2150 = vmatpush1.bf16.msra.mxu0 0
    %2151 = vmatprep.subr.bf16.mxu0 0
    %2152 = vmatpush1.bf16.msra.mxu0 0
    %2153 = vmatprep.subr.bf16.mxu0 0
    %2154 = vmatpush1.bf16.msra.mxu0 0
    %2155 = vmatprep.subr.bf16.mxu0 0
    %2156 = vmatpush1.bf16.msra.mxu0 0
    %2157 = vmatprep.subr.bf16.mxu0 0
    %2158 = vmatpush1.bf16.msra.mxu0 0
    %2159 = vmatprep.subr.bf16.mxu0 0
    %2160 = vmatpush1.bf16.msra.mxu0 0
    %2161 = vmatprep.subr.bf16.mxu0 0
    %2162 = vmatpush1.bf16.msra.mxu0 0
    %2163 = vmatprep.subr.bf16.mxu0 0
    %2164 = vmatpush1.bf16.msra.mxu0 0
    %2165 = vmatprep.subr.bf16.mxu0 0
    %2166 = vmatpush1.bf16.msra.mxu0 0
    %2167 = vmatprep.subr.bf16.mxu0 0
    %2168 = vmatpush1.bf16.msra.mxu0 0
    %2169 = vmatprep.mubr.bf16.mxu0 0
    %2170 = vmatmul.mubr.bf16.gmra.mrb[0].mxu0 %v2132
    %v2171 = vpop.f32.mrb[0].mxu0
    %v2172 = vadd.f32 0.0, %v2171
    %v2173 = vpop.f32.mrb[0].mxu0
    %v2174 = vpop.f32.mrb[0].mxu0
    %v2175 = vpop.f32.mrb[0].mxu0
    %2176 = vdwg.mxu0
    %v2177 = vpack.c.bf16 %v2076, %v2028
    %v2178 = vpack.c.bf16 %v2172, %v2124
    %v2179 = vld [vmem:[#allocation2 + $0xc] sm:$0xf]
    %v2181 = vsel %vm238, %v2177, 0
    %v2184 = vsel %vm238, %v2178, 0
    %v2187 = vsel %vm482, %v2179, 0
    %2189 = vmatprep.subr.bf16.mxu0 0
    %2190 = vmatpush1.bf16.msra.mxu0 %v2187
    %2191 = vmatprep.subr.bf16.mxu0 0
    %2192 = vmatpush1.bf16.msra.mxu0 0
    %2193 = vmatprep.subr.bf16.mxu0 0
    %2194 = vmatpush1.bf16.msra.mxu0 0
    %2195 = vmatprep.subr.bf16.mxu0 0
    %2196 = vmatpush1.bf16.msra.mxu0 0
    %2197 = vmatprep.subr.bf16.mxu0 0
    %2198 = vmatpush1.bf16.msra.mxu0 0
    %2199 = vmatprep.subr.bf16.mxu0 0
    %2200 = vmatpush1.bf16.msra.mxu0 0
    %2201 = vmatprep.subr.bf16.mxu0 0
    %2202 = vmatpush1.bf16.msra.mxu0 0
    %2203 = vmatprep.subr.bf16.mxu0 0
    %2204 = vmatpush1.bf16.msra.mxu0 0
    %2205 = vmatprep.subr.bf16.mxu0 0
    %2206 = vmatpush1.bf16.msra.mxu0 0
    %2207 = vmatprep.subr.bf16.mxu0 0
    %2208 = vmatpush1.bf16.msra.mxu0 0
    %2209 = vmatprep.subr.bf16.mxu0 0
    %2210 = vmatpush1.bf16.msra.mxu0 0
    %2211 = vmatprep.subr.bf16.mxu0 0
    %2212 = vmatpush1.bf16.msra.mxu0 0
    %2213 = vmatprep.subr.bf16.mxu0 0
    %2214 = vmatpush1.bf16.msra.mxu0 0
    %2215 = vmatprep.subr.bf16.mxu0 0
    %2216 = vmatpush1.bf16.msra.mxu0 0
    %2217 = vmatprep.subr.bf16.mxu0 0
    %2218 = vmatpush1.bf16.msra.mxu0 0
    %2219 = vmatprep.subr.bf16.mxu0 0
    %2220 = vmatpush1.bf16.msra.mxu0 0
    %2221 = vmatprep.mubr.bf16.mxu0 0
    %2222 = vmatmul.mubr.bf16.gmra.mrb[0].mxu0 %v2181
    %v2223 = vpop.f32.mrb[0].mxu0
    %v2224 = vadd.f32 0.0, %v2223
    %v2225 = vpop.f32.mrb[0].mxu0
    %v2226 = vpop.f32.mrb[0].mxu0
    %v2227 = vadd.f32 0.0, %v2226
    %v2228 = vpop.f32.mrb[0].mxu0
    %2229 = vmatprep.mubr.bf16.mxu0 0
    %2230 = vmatmul.mubr.bf16.gmra.mrb[0].mxu0 %v2184
    %v2231 = vpop.f32.mrb[0].mxu0
    %v2232 = vadd.f32 0.0, %v2231
    %v2233 = vpop.f32.mrb[0].mxu0
    %v2234 = vpop.f32.mrb[0].mxu0
    %v2235 = vadd.f32 0.0, %v2234
    %v2236 = vpop.f32.mrb[0].mxu0
    %2237 = vdwg.mxu0
    %v2238 = vadd.f32 %v1733, %v2224
    %v2239 = vadd.f32 %v1734, %v2227
    %v2240 = vadd.f32 %v1735, %v2232
    %v2241 = vadd.f32 %v1736, %v2235
    %v2242 = vld [vmem:[%s5] sm:$0x1]
    %v2244 = vlaneseq
    %v2245 = vshrl.u32 %v2244, 7
    %v2246 = vsub.s32 0, %v2245
    %v2247 = vrot.slane %v2242, %v2246
    %v2249 = vadd.f32 %v2238, %v2247
    %v2250 = vadd.f32 %v2239, %v2247
    %v2251 = vadd.f32 %v2240, %v2247
    %v2252 = vadd.f32 %v2241, %v2247
    %v2253 = vadd.f32 %v2249, %v71
    %v2254 = vadd.f32 %v2250, %v72
    %v2255 = vadd.f32 %v2251, %v73
    %v2256 = vadd.f32 %v2252, %v74
    %v2257 = vld [vmem:[%s6] sm:$0x1]
    %v2258 = vld [vmem:[%s7] sm:$0x1]
    %v2259 = vsel %vm77, %v2253, 0.0
    %2260 = vadd.xlane.f32.xlu0 %v2259
    %v2261 = vpop.xlane.xlu0 %2260
    %v2262 = vsel %vm77, %v2254, 0.0
    %2263 = vadd.xlane.f32.xlu0 %v2262
    %v2264 = vpop.xlane.xlu0 %2263
    %v2265 = vsel %vm77, %v2255, 0.0
    %2266 = vadd.xlane.f32.xlu0 %v2265
    %v2267 = vpop.xlane.xlu0 %2266
    %v2268 = vsel %vm77, %v2256, 0.0
    %2269 = vadd.xlane.f32.xlu0 %v2268
    %v2270 = vpop.xlane.xlu0 %2269
    %v2271 = vmul.f32 %v2261, %v90
    %v2272 = vmul.f32 %v2264, %v90
    %v2273 = vmul.f32 %v2267, %v90
    %v2274 = vmul.f32 %v2270, %v90
    %v2275 = vsub.f32 %v2253, %v2271
    %v2276 = vsub.f32 %v2254, %v2272
    %v2277 = vsub.f32 %v2255, %v2273
    %v2278 = vsub.f32 %v2256, %v2274
    %v2279 = vmul.f32 %v2275, %v2275
    %v2280 = vmul.f32 %v2276, %v2276
    %v2281 = vmul.f32 %v2277, %v2277
    %v2282 = vmul.f32 %v2278, %v2278
    %v2283 = vsel %vm77, %v2279, 0.0
    %2284 = vadd.xlane.f32.xlu0 %v2283
    %v2285 = vpop.xlane.xlu0 %2284
    %v2286 = vsel %vm77, %v2280, 0.0
    %2287 = vadd.xlane.f32.xlu0 %v2286
    %v2288 = vpop.xlane.xlu0 %2287
    %v2289 = vsel %vm77, %v2281, 0.0
    %2290 = vadd.xlane.f32.xlu0 %v2289
    %v2291 = vpop.xlane.xlu0 %2290
    %v2292 = vsel %vm77, %v2282, 0.0
    %2293 = vadd.xlane.f32.xlu0 %v2292
    %v2294 = vpop.xlane.xlu0 %2293
    %v2295 = vmul.f32 %v2285, %v90
    %v2296 = vmul.f32 %v2288, %v90
    %v2297 = vmul.f32 %v2291, %v90
    %v2298 = vmul.f32 %v2294, %v90
    %v2299 = vadd.f32 %v2295, 1e-05
    %v2300 = vadd.f32 %v2296, 1e-05
    %v2301 = vadd.f32 %v2297, 1e-05
    %v2302 = vadd.f32 %v2298, 1e-05
    %v2303 = vrsqrt.pop %v2299
    %v2304 = vrsqrt.pop %v2300
    %v2305 = vrsqrt.pop %v2301
    %v2306 = vrsqrt.pop %v2302
    %v2307 = vmul.f32 %v2275, %v2303
    %v2308 = vmul.f32 %v2276, %v2304
    %v2309 = vmul.f32 %v2277, %v2305
    %v2310 = vmul.f32 %v2278, %v2306
    %v2312 = vlaneseq
    %v2313 = vshrl.u32 %v2312, 7
    %v2314 = vsub.s32 0, %v2313
    %v2315 = vrot.slane %v2257, %v2314
    %v2317 = vmul.f32 %v2307, %v2315
    %v2318 = vmul.f32 %v2308, %v2315
    %v2319 = vmul.f32 %v2309, %v2315
    %v2320 = vmul.f32 %v2310, %v2315
    %v2322 = vlaneseq
    %v2323 = vshrl.u32 %v2322, 7
    %v2324 = vsub.s32 0, %v2323
    %v2325 = vrot.slane %v2258, %v2324
    %v2327 = vadd.f32 %v2317, %v2325
    %v2328 = vadd.f32 %v2318, %v2325
    %v2329 = vadd.f32 %v2319, %v2325
    %v2330 = vadd.f32 %v2320, %v2325
    %v2331 = vpack.c.bf16 %v2328, %v2327
    %v2332 = vpack.c.bf16 %v2330, %v2329
    %v2333 = vld [vmem:[#allocation5] sm:$0xf]
    %v2334 = vld [vmem:[#allocation5 + $0x4] sm:$0xf]
    %v2335 = vld [vmem:[#allocation5 + $0x8] sm:$0xf]
    %v2336 = vld [vmem:[#allocation5 + $0xc] sm:$0xf]
    %v2337 = vld [vmem:[%s9] sm:$0x1]
    %v2339 = vlaneseq
    %v2340 = vshrl.u32 %v2339, 7
    %v2341 = vsub.s32 0, %v2340
    %v2342 = vrot.slane %v2337, %v2341
    %v2348 = vunpack.c.l.b16 %v2333
    %v2349 = vunpack.c.l.b16 %v2334
    %v2350 = vunpack.c.l.b16 %v2335
    %v2351 = vunpack.c.l.b16 %v2336
    %v2352 = vpack.c.b16 %v2349, %v2348
    %v2353 = vpack.c.b16 %v2351, %v2350
    %v2357 = vsel %vm77, %v2331, 0
    %v2360 = vsel %vm77, %v2332, 0
    %2362 = vmatprep.subr.bf16.mxu0 0
    %2363 = vmatpush1.bf16.msra.mxu0 %v2352
    %2364 = vmatprep.subr.bf16.mxu0 0
    %2365 = vmatpush1.bf16.msra.mxu0 %v2353
    %2366 = vmatprep.subr.bf16.mxu0 0
    %2367 = vmatpush1.bf16.msra.mxu0 0
    %2368 = vmatprep.subr.bf16.mxu0 0
    %2369 = vmatpush1.bf16.msra.mxu0 0
    %2370 = vmatprep.subr.bf16.mxu0 0
    %2371 = vmatpush1.bf16.msra.mxu0 0
    %2372 = vmatprep.subr.bf16.mxu0 0
    %2373 = vmatpush1.bf16.msra.mxu0 0
    %2374 = vmatprep.subr.bf16.mxu0 0
    %2375 = vmatpush1.bf16.msra.mxu0 0
    %2376 = vmatprep.subr.bf16.mxu0 0
    %2377 = vmatpush1.bf16.msra.mxu0 0
    %2378 = vmatprep.subr.bf16.mxu0 0
    %2379 = vmatpush1.bf16.msra.mxu0 0
    %2380 = vmatprep.subr.bf16.mxu0 0
    %2381 = vmatpush1.bf16.msra.mxu0 0
    %2382 = vmatprep.subr.bf16.mxu0 0
    %2383 = vmatpush1.bf16.msra.mxu0 0
    %2384 = vmatprep.subr.bf16.mxu0 0
    %2385 = vmatpush1.bf16.msra.mxu0 0
    %2386 = vmatprep.subr.bf16.mxu0 0
    %2387 = vmatpush1.bf16.msra.mxu0 0
    %2388 = vmatprep.subr.bf16.mxu0 0
    %2389 = vmatpush1.bf16.msra.mxu0 0
    %2390 = vmatprep.subr.bf16.mxu0 0
    %2391 = vmatpush1.bf16.msra.mxu0 0
    %2392 = vmatprep.subr.bf16.mxu0 0
    %2393 = vmatpush1.bf16.msra.mxu0 0
    %2394 = vmatprep.mubr.bf16.mxu0 0
    %2395 = vmatmul.mubr.bf16.gmra.mrb[0].mxu0 %v2357
    %v2396 = vpop.f32.mrb[0].mxu0
    %v2397 = vadd.f32 %v2342, %v2396
    %v2398 = vpop.f32.mrb[0].mxu0
    %v2399 = vpop.f32.mrb[0].mxu0
    %v2400 = vadd.f32 %v2342, %v2399
    %v2401 = vpop.f32.mrb[0].mxu0
    %2402 = vmatprep.mubr.bf16.mxu0 0
    %2403 = vmatmul.mubr.bf16.gmra.mrb[0].mxu0 %v2360
    %v2404 = vpop.f32.mrb[0].mxu0
    %v2405 = vadd.f32 %v2342, %v2404
    %v2406 = vpop.f32.mrb[0].mxu0
    %v2407 = vpop.f32.mrb[0].mxu0
    %v2408 = vadd.f32 %v2342, %v2407
    %v2409 = vpop.f32.mrb[0].mxu0
    %2410 = vdwg.mxu0
    %v2411 = vxor.u32 %v2397, 2147483648
    %v2412 = vxor.u32 %v2400, 2147483648
    %v2413 = vxor.u32 %v2405, 2147483648
    %v2414 = vxor.u32 %v2408, 2147483648
    %v2415 = vmul.f32 %v2411, 1.442695
    %v2416 = vpow.pop %v2415
    %v2417 = vmul.f32 %v2412, 1.442695
    %v2418 = vpow.pop %v2417
    %v2419 = vmul.f32 %v2413, 1.442695
    %v2420 = vpow.pop %v2419
    %v2421 = vmul.f32 %v2414, 1.442695
    %v2422 = vpow.pop %v2421
    %v2423 = vadd.f32 %v2416, 1.0
    %v2424 = vadd.f32 %v2418, 1.0
    %v2425 = vadd.f32 %v2420, 1.0
    %v2426 = vadd.f32 %v2422, 1.0
    %v2427 = vrcp.pop %v2423
    %v2428 = vmul.f32 1.0, %v2427
    %v2429 = vrcp.pop %v2424
    %v2430 = vmul.f32 1.0, %v2429
    %v2431 = vrcp.pop %v2425
    %v2432 = vmul.f32 1.0, %v2431
    %v2433 = vrcp.pop %v2426
    %v2434 = vmul.f32 1.0, %v2433
    %v2435 = vmul.f32 %v2397, %v2428
    %v2436 = vmul.f32 %v2400, %v2430
    %v2437 = vmul.f32 %v2405, %v2432
    %v2438 = vmul.f32 %v2408, %v2434
    %v2439 = vpack.c.bf16 %v2436, %v2435
    %v2440 = vpack.c.bf16 %v2438, %v2437
    %v2441 = vld [vmem:[%s10] sm:$0xf]
    %v2442 = vld [vmem:[%s10 + $0x4] sm:$0xf]
    %v2443 = vld [vmem:[%s10 + $0x8] sm:$0xf]
    %v2444 = vld [vmem:[%s10 + $0xc] sm:$0xf]
    %v2445 = vld [vmem:[%s10 + $0x10] sm:$0xf]
    %v2446 = vld [vmem:[%s10 + $0x14] sm:$0xf]
    %v2447 = vld [vmem:[%s10 + $0x18] sm:$0xf]
    %v2448 = vld [vmem:[%s10 + $0x1c] sm:$0xf]
    %v2449 = vld [vmem:[%s11] sm:$0x1]
    %v2451 = vlaneseq
    %v2452 = vshrl.u32 %v2451, 7
    %v2453 = vsub.s32 0, %v2452
    %v2454 = vrot.slane %v2449, %v2453
    %v2464 = vunpack.c.l.b16 %v2441
    %v2465 = vunpack.c.l.b16 %v2442
    %v2466 = vunpack.c.l.b16 %v2443
    %v2467 = vunpack.c.l.b16 %v2444
    %v2468 = vunpack.c.l.b16 %v2445
    %v2469 = vunpack.c.l.b16 %v2446
    %v2470 = vunpack.c.l.b16 %v2447
    %v2471 = vunpack.c.l.b16 %v2448
    %v2472 = vpack.c.b16 %v2465, %v2464
    %v2473 = vpack.c.b16 %v2467, %v2466
    %v2474 = vpack.c.b16 %v2469, %v2468
    %v2475 = vpack.c.b16 %v2471, %v2470
    %vm2480 = vcmask 523264
    %v2482 = vsel %vm2480, %v2439, 0
    %v2485 = vsel %vm2480, %v2440, 0
    %2487 = vmatprep.subr.bf16.mxu0 0
    %2488 = vmatpush1.bf16.msra.mxu0 %v2472
    %2489 = vmatprep.subr.bf16.mxu0 0
    %2490 = vmatpush1.bf16.msra.mxu0 %v2473
    %2491 = vmatprep.subr.bf16.mxu0 0
    %2492 = vmatpush1.bf16.msra.mxu0 %v2474
    %2493 = vmatprep.subr.bf16.mxu0 0
    %2494 = vmatpush1.bf16.msra.mxu0 %v2475
    %2495 = vmatprep.subr.bf16.mxu0 0
    %2496 = vmatpush1.bf16.msra.mxu0 0
    %2497 = vmatprep.subr.bf16.mxu0 0
    %2498 = vmatpush1.bf16.msra.mxu0 0
    %2499 = vmatprep.subr.bf16.mxu0 0
    %2500 = vmatpush1.bf16.msra.mxu0 0
    %2501 = vmatprep.subr.bf16.mxu0 0
    %2502 = vmatpush1.bf16.msra.mxu0 0
    %2503 = vmatprep.subr.bf16.mxu0 0
    %2504 = vmatpush1.bf16.msra.mxu0 0
    %2505 = vmatprep.subr.bf16.mxu0 0
    %2506 = vmatpush1.bf16.msra.mxu0 0
    %2507 = vmatprep.subr.bf16.mxu0 0
    %2508 = vmatpush1.bf16.msra.mxu0 0
    %2509 = vmatprep.subr.bf16.mxu0 0
    %2510 = vmatpush1.bf16.msra.mxu0 0
    %2511 = vmatprep.subr.bf16.mxu0 0
    %2512 = vmatpush1.bf16.msra.mxu0 0
    %2513 = vmatprep.subr.bf16.mxu0 0
    %2514 = vmatpush1.bf16.msra.mxu0 0
    %2515 = vmatprep.subr.bf16.mxu0 0
    %2516 = vmatpush1.bf16.msra.mxu0 0
    %2517 = vmatprep.subr.bf16.mxu0 0
    %2518 = vmatpush1.bf16.msra.mxu0 0
    %2519 = vmatprep.mubr.bf16.mxu0 0
    %2520 = vmatmul.mubr.bf16.gmra.mrb[0].mxu0 %v2482
    %v2521 = vpop.f32.mrb[0].mxu0
    %v2522 = vadd.f32 %v2454, %v2521
    %v2523 = vpop.f32.mrb[0].mxu0
    %v2524 = vpop.f32.mrb[0].mxu0
    %v2525 = vadd.f32 %v2454, %v2524
    %v2526 = vpop.f32.mrb[0].mxu0
    %2527 = vmatprep.mubr.bf16.mxu0 0
    %2528 = vmatmul.mubr.bf16.gmra.mrb[0].mxu0 %v2485
    %v2529 = vpop.f32.mrb[0].mxu0
    %v2530 = vadd.f32 %v2454, %v2529
    %v2531 = vpop.f32.mrb[0].mxu0
    %v2532 = vpop.f32.mrb[0].mxu0
    %v2533 = vadd.f32 %v2454, %v2532
    %v2534 = vpop.f32.mrb[0].mxu0
    %2535 = vdwg.mxu0
    %v2536 = vadd.f32 %v2522, %v2253
    %v2537 = vadd.f32 %v2525, %v2254
    %v2538 = vadd.f32 %v2530, %v2255
    %v2539 = vadd.f32 %v2533, %v2256
    %2540 = vst.msk [vmem:[#allocation7] sm:$0xff] %vm77, %v2536
    %2541 = vst.msk [vmem:[#allocation7 + $0x8] sm:$0xff] %vm77, %v2537
    %2542 = vst.msk [vmem:[#allocation7 + $0x10] sm:$0xff] %vm77, %v2538
    %2543 = vst.msk [vmem:[#allocation7 + $0x18] sm:$0xff] %vm77, %v2539
    // Predicated region
    $region58: #{tpu_custom_call.1} parent=1 // pred_check
      _
    $region59: #{tpu_custom_call.1} parent=1 // pred_check_branch
      %2545 = sbr.rel (0) target = $region61
    $region60: #{tpu_custom_call.1} parent=1 // pred_region
      %s2547 = ssub.s32 512, 512
      %2548 = vsyncadd [#allocation4], %s2547
      %s2549 = sshll.u32 [#allocation7], 4
      %s2550 = int_to_ptr.vmem [resolvable:$true] %s2549
      %2555 = dma.vmem_to_hbm [thread:$0]  %s2550, 512, %s12, [#allocation4], 128, 128, 8
    $region61: #{tpu_custom_call.1} parent=1 // pred_fallthru
      _
    // Predicated region
    $region62: #{tpu_custom_call.1} parent=1 // pred_check
      _
    $region63: #{tpu_custom_call.1} parent=1 // pred_check_branch
      %2557 = sbr.rel (0) target = $region65
    $region64: #{tpu_custom_call.1} parent=1 // pred_region
      %2558 = dma.done [#allocation4], 512
    $region65: #{tpu_custom_call.1} parent=1 // pred_fallthru
      _
    %2559 = vsyncpa [#allocation3], 1
    %2560 = vsyncpa [#allocation6], 1
    %2561 = vsyncpa [#allocation4], 1

</llo_original>
